<compile_context>
chip_gen: v7x
topology: tpu7x:2x2x1
jax: 0.10.0
libtpu: 0.0.40
codegen_flags: <defaults>
</compile_context>

<pallas_src>
import functools

import jax
import jax.numpy as jnp
from jax.experimental import pallas as pl
from jax.experimental.pallas import tpu as pltpu


# ----------------------------------------------------------------------------
# Fused kernel: conv (in-kernel im2col) + bias + LeakyReLU + batch stats + BN
# ----------------------------------------------------------------------------
def unet_block_kernel(x_ref, w_ref, bgb_ref, msk_ref, o_ref,
                      sum_ref, ssq_ref, scale_ref, shift_ref,
                      *, c_in, kh, kw, wp, lq_pad, inv_m, eps, neg_slope):
    p = pl.program_id(0)          # phase: 0 = stats pass, 1 = normalize+write
    b = pl.program_id(1)          # sample index

    @pl.when((p == 0) & (b == 0))
    def _init():
        sum_ref[...] = jnp.zeros_like(sum_ref)
        ssq_ref[...] = jnp.zeros_like(ssq_ref)

    # ---- conv as kh*kw statically-shifted matmuls (fused im2col) -----------
    # Recomputed in both phases: this kernel is memory-bound and the MXU is
    # essentially idle, so recompute beats keeping y resident or spilling it.
    c_pad = o_ref.shape[1]
    acc = jnp.zeros((c_pad, lq_pad), jnp.float32)
    for idx in range(kh * kw):
        i, j = divmod(idx, kw)
        off = i * wp + j                                   # static lane offset
        acc = acc + jnp.dot(w_ref[idx], x_ref[0, :, off:off + lq_pad],
                            preferred_element_type=jnp.float32)
    acc = acc + bgb_ref[:, 0:1]                            # conv bias (C, 1)
    y = jnp.where(acc > 0, acc, jnp.float32(neg_slope) * acc)   # LeakyReLU(0.2)

    @pl.when(p == 0)
    def _stats():
        # Mask kills the junk columns (ow >= Wo) and lane padding so they do
        # not pollute the batch statistics.
        ym = y * msk_ref[...]
        sum_ref[...] += jnp.sum(ym, axis=1, keepdims=True)
        ssq_ref[...] += jnp.sum(ym * ym, axis=1, keepdims=True)
        # TODO(synk): for multi-megapixel batches use per-sample partial sums
        # with a compensated combine (E[y^2]-E[y]^2 in plain f32 can cancel).

    @pl.when((p == 1) & (b == 0))
    def _fold_bn():
        mean = sum_ref[...] * jnp.float32(inv_m)
        var = jnp.maximum(ssq_ref[...] * jnp.float32(inv_m) - mean * mean, 0.0)
        scale = bgb_ref[:, 1:2] * jax.lax.rsqrt(var + jnp.float32(eps))
        scale_ref[...] = scale
        shift_ref[...] = bgb_ref[:, 2:3] - mean * scale

    @pl.when(p == 1)
    def _normalize_and_write():
        o_ref[0] = y * scale_ref[...] + shift_ref[...]


# ----------------------------------------------------------------------------
# Glue
# ----------------------------------------------------------------------------
def _round_up(x, m):
    return (x + m - 1) // m * m


@functools.partial(jax.jit, static_argnames=("stride", "padding"))
def unet_block_forward(x_nchw, weight, bias, gamma, beta, *, stride, padding):
    """x_nchw: (N, C_in, H, W); weight: (C_out, C_in, KH, KW) (PyTorch layout)."""
    n, c_in, h, w = x_nchw.shape
    c_out, _, kh, kw = weight.shape
    if stride != 1:
        # TODO(synk): general stride via stride-s lane windows
        # (pl.ds(..., stride=s)) or a space-to-batch pre-pass.
        raise NotImplementedError("fused Pallas UnetBlock currently supports stride=1")
    # TODO(synk): BatchNorm running_mean/running_var momentum update (a buffer
    # side effect in the PyTorch module) is not produced here; the forward
    # output in training mode does not depend on it.

    hp, wp = h + 2 * padding, w + 2 * padding
    ho, wo = hp - kh + 1, wp - kw + 1
    lq = ho * wp                               # per-sample q axis (junk cols at ow>=Wo)
    lq_pad = _round_up(lq, 128)                # lane-dense per-sample output width
    max_off = (kh - 1) * wp + (kw - 1)
    lin = _round_up(lq_pad + max_off, 128)     # flattened padded input length / sample
    c_pad = _round_up(c_out, 8)
    m_true = n * ho * wo                       # BN population per channel

    # Spatially padded input, flattened per sample, bf16 (halves the HBM read).
    x_p = jnp.pad(x_nchw.astype(jnp.bfloat16),
                  ((0, 0), (0, 0), (padding, padding), (padding, padding)))
    x_flat = jnp.pad(x_p.reshape(n, c_in, hp * wp),
                     ((0, 0), (0, 0), (0, lin - hp * wp)))

    # Weights as (KH*KW, C_out_pad, C_in); bias|gamma|beta packed in one input.
    w_t = jnp.transpose(weight, (2, 3, 0, 1)).reshape(kh * kw, c_out, c_in)
    w_t = jnp.pad(w_t, ((0, 0), (0, c_pad - c_out), (0, 0))).astype(jnp.bfloat16)
    bgb = jnp.pad(jnp.stack([bias, gamma, beta], axis=1).astype(jnp.float32),
                  ((0, c_pad - c_out), (0, 0)))

    # Validity mask over the per-sample q axis: q < Ho*Wp and (q mod Wp) < Wo.
    q = jnp.arange(lq_pad, dtype=jnp.int32)
    msk = ((q < lq) & ((q % wp) < wo)).astype(jnp.float32).reshape(1, lq_pad)

    kernel = functools.partial(unet_block_kernel, c_in=c_in, kh=kh, kw=kw, wp=wp,
                               lq_pad=lq_pad, inv_m=1.0 / m_true, eps=1e-5,
                               neg_slope=0.2)

    # Explicit VMEM budget (v5e scoped default: 16 MiB; v7x physical: 64 MiB).
    est = (2 * (8 * lin * 2 + c_pad * lq_pad * 4)           # dbl-buffered x, out blocks
           + kh * kw * c_pad * 128 * 2                      # resident weights
           + c_pad * 128 * 4 + 8 * lq_pad * 4)              # bgb + mask
    vmem_limit = int(max(16 * 2 ** 20, min(48 * 2 ** 20, 8 * est)))
    # TODO(synk): for very large feature maps (c_pad*lq_pad*4 approaching the
    # VMEM budget) add a q-tile grid axis (needs dynamic lane-offset windows).

    out = pl.pallas_call(
        kernel,
        out_shape=jax.ShapeDtypeStruct((n, c_pad, lq_pad), jnp.float32),
        grid_spec=pltpu.PrefetchScalarGridSpec(
            num_scalar_prefetch=0,
            grid=(2, n),                                     # (phase, sample)
            in_specs=[
                pl.BlockSpec((1, c_in, lin), lambda p, b: (b, 0, 0)),           # x (per-sample)
                pl.BlockSpec((kh * kw, c_pad, c_in), lambda p, b: (0, 0, 0)),   # weights (resident)
                pl.BlockSpec((c_pad, 3), lambda p, b: (0, 0)),                  # bias|gamma|beta
                pl.BlockSpec((1, lq_pad), lambda p, b: (0, 0)),                 # stats mask
            ],
            # Phase 0 pins the output index at (0,0,0) (no writebacks, block is
            # never written); phase 1 walks the per-sample blocks, so the HBM
            # writeback is double-buffered and overlapped with the next
            # sample's compute.
            out_specs=pl.BlockSpec((1, c_pad, lq_pad), lambda p, b: (b * p, 0, 0)),
            scratch_shapes=[
                pltpu.VMEM((c_pad, 1), jnp.float32),   # per-channel sum(y)
                pltpu.VMEM((c_pad, 1), jnp.float32),   # per-channel sum(y*y)
                pltpu.VMEM((c_pad, 1), jnp.float32),   # folded BN scale
                pltpu.VMEM((c_pad, 1), jnp.float32),   # folded BN shift
            ],
        ),
        # Stats accumulate across both axes -> sequential grid.
        # TODO(synk): on v7x split the sample axis across both TensorCores with
        # per-core partial sums combined before phase 1.
        compiler_params=pltpu.CompilerParams(
            dimension_semantics=("arbitrary", "arbitrary"),
            vmem_limit_bytes=vmem_limit),
    )(x_flat, w_t, bgb, msk)

    # NCHW with NO transpose: drop channel padding and the junk columns only.
    return out[:, :c_out, :lq].reshape(n, c_out, ho, wp)[:, :, :, :wo]


# ----------------------------------------------------------------------------
# Pure-JAX reference (silent sanity check)
# ----------------------------------------------------------------------------
def _reference(x_nchw, weight, bias, gamma, beta, stride, padding):
    y = jax.lax.conv_general_dilated(
        x_nchw.astype(jnp.float32), weight.astype(jnp.float32),
        window_strides=(stride, stride),
        padding=[(padding, padding), (padding, padding)],
        dimension_numbers=("NCHW", "OIHW", "NCHW"),
        precision=jax.lax.Precision.HIGHEST)
    y = y + bias.reshape(1, -1, 1, 1)
    y = jnp.where(y > 0, y, 0.2 * y)
    mean = jnp.mean(y, axis=(0, 2, 3), keepdims=True)
    var = jnp.mean((y - mean) ** 2, axis=(0, 2, 3), keepdims=True)
    y = (y - mean) * jax.lax.rsqrt(var + 1e-5)
    return y * gamma.reshape(1, -1, 1, 1) + beta.reshape(1, -1, 1, 1)


if __name__ == "__main__":
    # UnetBlock(in_channels=4, out_channels=8, kernel_size=3, stride=1,
    #           padding=1, bias=True)
    N, C_IN, H, W = 2, 4, 16, 16
    C_OUT, KH, KW = 8, 3, 3
    STRIDE, PADDING = 1, 1

    key = jax.random.PRNGKey(0)
    kx, kw_, kb, kg, kbeta = jax.random.split(key, 5)
    x = jax.random.normal(kx, (N, C_IN, H, W), dtype=jnp.float32)
    weight = 0.1 * jax.random.normal(kw_, (C_OUT, C_IN, KH, KW), dtype=jnp.float32)
    bias = 0.1 * jax.random.normal(kb, (C_OUT,), dtype=jnp.float32)
    gamma = 1.0 + 0.05 * jax.random.normal(kg, (C_OUT,), dtype=jnp.float32)
    beta = 0.05 * jax.random.normal(kbeta, (C_OUT,), dtype=jnp.float32)

    out = unet_block_forward(x, weight, bias, gamma, beta,
                             stride=STRIDE, padding=PADDING)
    out = jax.block_until_ready(out)

    # Reference computed on the same bf16-rounded conv operands the kernel's
    # MXU matmuls consume (f32 accumulation on both sides).
    xq = x.astype(jnp.bfloat16).astype(jnp.float32)
    wq = weight.astype(jnp.bfloat16).astype(jnp.float32)
    ref = _reference(xq, wq, bias, gamma, beta, STRIDE, PADDING)

    assert out.shape == (N, C_OUT, H, W), out.shape
    err = float(jnp.max(jnp.abs(out - ref)))
    assert err < 1e-3, err
    print("KERNEL_OK")
</pallas_src>

<mosaic_0001>
module attributes {stable_mosaic.version = 11 : i64} {
  func.func @unet_block_kernel(%arg0: i32, %arg1: i32, %arg2: memref<1x4x512xbf16, #tpu.memory_space<vmem>>, %arg3: memref<9x8x4xbf16, #tpu.memory_space<vmem>>, %arg4: memref<8x3xf32, #tpu.memory_space<vmem>>, %arg5: memref<1x384xf32, #tpu.memory_space<vmem>>, %arg6: memref<1x8x384xf32, #tpu.memory_space<vmem>>, %arg7: memref<8x1xf32, #tpu.memory_space<vmem>>, %arg8: memref<8x1xf32, #tpu.memory_space<vmem>>, %arg9: memref<8x1xf32, #tpu.memory_space<vmem>>, %arg10: memref<8x1xf32, #tpu.memory_space<vmem>>) attributes {dimension_semantics = [#tpu.dimension_semantics<arbitrary>, #tpu.dimension_semantics<arbitrary>], iteration_bounds = array<i64: 2, 2>, scalar_prefetch = 0 : i64, scratch_operands = 4 : i64, tpu.core_type = #tpu.core_type<tc>, window_params = [{transform_indices = @transform_0, window_bounds = array<i64: 1, 4, 512>}, {pipeline_mode = #tpu.pipeline_mode<synchronous>, transform_indices = @transform_1, window_bounds = array<i64: 9, 8, 4>}, {pipeline_mode = #tpu.pipeline_mode<synchronous>, transform_indices = @transform_2, window_bounds = array<i64: 8, 3>}, {pipeline_mode = #tpu.pipeline_mode<synchronous>, transform_indices = @transform_3, window_bounds = array<i64: 1, 384>}, {transform_indices = @transform_4, window_bounds = array<i64: 1, 8, 384>}]} {
    %c0_i32 = arith.constant 0 : i32
    %0 = arith.cmpi eq, %arg0, %c0_i32 : i32
    %c0_i32_0 = arith.constant 0 : i32
    %1 = arith.cmpi eq, %arg1, %c0_i32_0 : i32
    %2 = arith.andi %0, %1 : i1
    %3 = arith.extui %2 : i1 to i32
    %c0_i32_1 = arith.constant 0 : i32
    %4 = arith.cmpi ne, %3, %c0_i32_1 : i32
    scf.if %4 {
      %cst_60 = arith.constant 0.000000e+00 : f32
      %79 = vector.broadcast %cst_60 : f32 to vector<8x1xf32>
      %c0_61 = arith.constant 0 : index
      %c0_62 = arith.constant 0 : index
      %80 = vector.load %arg7[%c0_61, %c0_62] : memref<8x1xf32, #tpu.memory_space<vmem>>, vector<8x1xf32>
      tpu.vector_store %arg7[%c0_61, %c0_62], %79 {strides = array<i32>} : memref<8x1xf32, #tpu.memory_space<vmem>>, vector<8x1xf32>,
      %cst_63 = arith.constant 0.000000e+00 : f32
      %81 = vector.broadcast %cst_63 : f32 to vector<8x1xf32>
      %c0_64 = arith.constant 0 : index
      %c0_65 = arith.constant 0 : index
      %82 = vector.load %arg8[%c0_64, %c0_65] : memref<8x1xf32, #tpu.memory_space<vmem>>, vector<8x1xf32>
      tpu.vector_store %arg8[%c0_64, %c0_65], %81 {strides = array<i32>} : memref<8x1xf32, #tpu.memory_space<vmem>>, vector<8x1xf32>,
    } else {
    }
    %cst = arith.constant 0.000000e+00 : f32
    %5 = vector.broadcast %cst : f32 to vector<8x384xf32>
    %c0 = arith.constant 0 : index
    %c0_2 = arith.constant 0 : index
    %c0_3 = arith.constant 0 : index
    %6 = vector.load %arg3[%c0, %c0_2, %c0_3] : memref<9x8x4xbf16, #tpu.memory_space<vmem>>, vector<1x8x4xbf16>
    %7 = vector.shape_cast %6 : vector<1x8x4xbf16> to vector<8x4xbf16>
    %c0_4 = arith.constant 0 : index
    %c0_5 = arith.constant 0 : index
    %c0_6 = arith.constant 0 : index
    %8 = vector.load %arg2[%c0_4, %c0_5, %c0_6] : memref<1x4x512xbf16, #tpu.memory_space<vmem>>, vector<1x4x384xbf16>
    %9 = vector.shape_cast %8 : vector<1x4x384xbf16> to vector<4x384xbf16>
    %cst_7 = arith.constant dense<0.000000e+00> : vector<8x384xf32>
    %10 = tpu.matmul %7, %9, %cst_7 {dimension_numbers = #tpu.dot_dimension_numbers<[1], [0], [0], [1], [0, 0, 1, 1], [], []>} : vector<8x4xbf16>, vector<4x384xbf16>, vector<8x384xf32> -> vector<8x384xf32>
    %11 = arith.addf %5, %10 : vector<8x384xf32>
    %c1 = arith.constant 1 : index
    %c0_8 = arith.constant 0 : index
    %c0_9 = arith.constant 0 : index
    %12 = vector.load %arg3[%c1, %c0_8, %c0_9] : memref<9x8x4xbf16, #tpu.memory_space<vmem>>, vector<1x8x4xbf16>
    %13 = vector.shape_cast %12 : vector<1x8x4xbf16> to vector<8x4xbf16>
    %c0_10 = arith.constant 0 : index
    %c0_11 = arith.constant 0 : index
    %c1_12 = arith.constant 1 : index
    %14 = vector.load %arg2[%c0_10, %c0_11, %c1_12] : memref<1x4x512xbf16, #tpu.memory_space<vmem>>, vector<1x4x384xbf16>
    %15 = vector.shape_cast %14 : vector<1x4x384xbf16> to vector<4x384xbf16>
    %cst_13 = arith.constant dense<0.000000e+00> : vector<8x384xf32>
    %16 = tpu.matmul %13, %15, %cst_13 {dimension_numbers = #tpu.dot_dimension_numbers<[1], [0], [0], [1], [0, 0, 1, 1], [], []>} : vector<8x4xbf16>, vector<4x384xbf16>, vector<8x384xf32> -> vector<8x384xf32>
    %17 = arith.addf %11, %16 : vector<8x384xf32>
    %c2 = arith.constant 2 : index
    %c0_14 = arith.constant 0 : index
    %c0_15 = arith.constant 0 : index
    %18 = vector.load %arg3[%c2, %c0_14, %c0_15] : memref<9x8x4xbf16, #tpu.memory_space<vmem>>, vector<1x8x4xbf16>
    %19 = vector.shape_cast %18 : vector<1x8x4xbf16> to vector<8x4xbf16>
    %c0_16 = arith.constant 0 : index
    %c0_17 = arith.constant 0 : index
    %c2_18 = arith.constant 2 : index
    %20 = vector.load %arg2[%c0_16, %c0_17, %c2_18] : memref<1x4x512xbf16, #tpu.memory_space<vmem>>, vector<1x4x384xbf16>
    %21 = vector.shape_cast %20 : vector<1x4x384xbf16> to vector<4x384xbf16>
    %cst_19 = arith.constant dense<0.000000e+00> : vector<8x384xf32>
    %22 = tpu.matmul %19, %21, %cst_19 {dimension_numbers = #tpu.dot_dimension_numbers<[1], [0], [0], [1], [0, 0, 1, 1], [], []>} : vector<8x4xbf16>, vector<4x384xbf16>, vector<8x384xf32> -> vector<8x384xf32>
    %23 = arith.addf %17, %22 : vector<8x384xf32>
    %c3 = arith.constant 3 : index
    %c0_20 = arith.constant 0 : index
    %c0_21 = arith.constant 0 : index
    %24 = vector.load %arg3[%c3, %c0_20, %c0_21] : memref<9x8x4xbf16, #tpu.memory_space<vmem>>, vector<1x8x4xbf16>
    %25 = vector.shape_cast %24 : vector<1x8x4xbf16> to vector<8x4xbf16>
    %c0_22 = arith.constant 0 : index
    %c0_23 = arith.constant 0 : index
    %c18 = arith.constant 18 : index
    %26 = vector.load %arg2[%c0_22, %c0_23, %c18] : memref<1x4x512xbf16, #tpu.memory_space<vmem>>, vector<1x4x384xbf16>
    %27 = vector.shape_cast %26 : vector<1x4x384xbf16> to vector<4x384xbf16>
    %cst_24 = arith.constant dense<0.000000e+00> : vector<8x384xf32>
    %28 = tpu.matmul %25, %27, %cst_24 {dimension_numbers = #tpu.dot_dimension_numbers<[1], [0], [0], [1], [0, 0, 1, 1], [], []>} : vector<8x4xbf16>, vector<4x384xbf16>, vector<8x384xf32> -> vector<8x384xf32>
    %29 = arith.addf %23, %28 : vector<8x384xf32>
    %c4 = arith.constant 4 : index
    %c0_25 = arith.constant 0 : index
    %c0_26 = arith.constant 0 : index
    %30 = vector.load %arg3[%c4, %c0_25, %c0_26] : memref<9x8x4xbf16, #tpu.memory_space<vmem>>, vector<1x8x4xbf16>
    %31 = vector.shape_cast %30 : vector<1x8x4xbf16> to vector<8x4xbf16>
    %c0_27 = arith.constant 0 : index
    %c0_28 = arith.constant 0 : index
    %c19 = arith.constant 19 : index
    %32 = vector.load %arg2[%c0_27, %c0_28, %c19] : memref<1x4x512xbf16, #tpu.memory_space<vmem>>, vector<1x4x384xbf16>
    %33 = vector.shape_cast %32 : vector<1x4x384xbf16> to vector<4x384xbf16>
    %cst_29 = arith.constant dense<0.000000e+00> : vector<8x384xf32>
    %34 = tpu.matmul %31, %33, %cst_29 {dimension_numbers = #tpu.dot_dimension_numbers<[1], [0], [0], [1], [0, 0, 1, 1], [], []>} : vector<8x4xbf16>, vector<4x384xbf16>, vector<8x384xf32> -> vector<8x384xf32>
    %35 = arith.addf %29, %34 : vector<8x384xf32>
    %c5 = arith.constant 5 : index
    %c0_30 = arith.constant 0 : index
    %c0_31 = arith.constant 0 : index
    %36 = vector.load %arg3[%c5, %c0_30, %c0_31] : memref<9x8x4xbf16, #tpu.memory_space<vmem>>, vector<1x8x4xbf16>
    %37 = vector.shape_cast %36 : vector<1x8x4xbf16> to vector<8x4xbf16>
    %c0_32 = arith.constant 0 : index
    %c0_33 = arith.constant 0 : index
    %c20 = arith.constant 20 : index
    %38 = vector.load %arg2[%c0_32, %c0_33, %c20] : memref<1x4x512xbf16, #tpu.memory_space<vmem>>, vector<1x4x384xbf16>
    %39 = vector.shape_cast %38 : vector<1x4x384xbf16> to vector<4x384xbf16>
    %cst_34 = arith.constant dense<0.000000e+00> : vector<8x384xf32>
    %40 = tpu.matmul %37, %39, %cst_34 {dimension_numbers = #tpu.dot_dimension_numbers<[1], [0], [0], [1], [0, 0, 1, 1], [], []>} : vector<8x4xbf16>, vector<4x384xbf16>, vector<8x384xf32> -> vector<8x384xf32>
    %41 = arith.addf %35, %40 : vector<8x384xf32>
    %c6 = arith.constant 6 : index
    %c0_35 = arith.constant 0 : index
    %c0_36 = arith.constant 0 : index
    %42 = vector.load %arg3[%c6, %c0_35, %c0_36] : memref<9x8x4xbf16, #tpu.memory_space<vmem>>, vector<1x8x4xbf16>
    %43 = vector.shape_cast %42 : vector<1x8x4xbf16> to vector<8x4xbf16>
    %c0_37 = arith.constant 0 : index
    %c0_38 = arith.constant 0 : index
    %c36 = arith.constant 36 : index
    %44 = vector.load %arg2[%c0_37, %c0_38, %c36] : memref<1x4x512xbf16, #tpu.memory_space<vmem>>, vector<1x4x384xbf16>
    %45 = vector.shape_cast %44 : vector<1x4x384xbf16> to vector<4x384xbf16>
    %cst_39 = arith.constant dense<0.000000e+00> : vector<8x384xf32>
    %46 = tpu.matmul %43, %45, %cst_39 {dimension_numbers = #tpu.dot_dimension_numbers<[1], [0], [0], [1], [0, 0, 1, 1], [], []>} : vector<8x4xbf16>, vector<4x384xbf16>, vector<8x384xf32> -> vector<8x384xf32>
    %47 = arith.addf %41, %46 : vector<8x384xf32>
    %c7 = arith.constant 7 : index
    %c0_40 = arith.constant 0 : index
    %c0_41 = arith.constant 0 : index
    %48 = vector.load %arg3[%c7, %c0_40, %c0_41] : memref<9x8x4xbf16, #tpu.memory_space<vmem>>, vector<1x8x4xbf16>
    %49 = vector.shape_cast %48 : vector<1x8x4xbf16> to vector<8x4xbf16>
    %c0_42 = arith.constant 0 : index
    %c0_43 = arith.constant 0 : index
    %c37 = arith.constant 37 : index
    %50 = vector.load %arg2[%c0_42, %c0_43, %c37] : memref<1x4x512xbf16, #tpu.memory_space<vmem>>, vector<1x4x384xbf16>
    %51 = vector.shape_cast %50 : vector<1x4x384xbf16> to vector<4x384xbf16>
    %cst_44 = arith.constant dense<0.000000e+00> : vector<8x384xf32>
    %52 = tpu.matmul %49, %51, %cst_44 {dimension_numbers = #tpu.dot_dimension_numbers<[1], [0], [0], [1], [0, 0, 1, 1], [], []>} : vector<8x4xbf16>, vector<4x384xbf16>, vector<8x384xf32> -> vector<8x384xf32>
    %53 = arith.addf %47, %52 : vector<8x384xf32>
    %c8 = arith.constant 8 : index
    %c0_45 = arith.constant 0 : index
    %c0_46 = arith.constant 0 : index
    %54 = vector.load %arg3[%c8, %c0_45, %c0_46] : memref<9x8x4xbf16, #tpu.memory_space<vmem>>, vector<1x8x4xbf16>
    %55 = vector.shape_cast %54 : vector<1x8x4xbf16> to vector<8x4xbf16>
    %c0_47 = arith.constant 0 : index
    %c0_48 = arith.constant 0 : index
    %c38 = arith.constant 38 : index
    %56 = vector.load %arg2[%c0_47, %c0_48, %c38] : memref<1x4x512xbf16, #tpu.memory_space<vmem>>, vector<1x4x384xbf16>
    %57 = vector.shape_cast %56 : vector<1x4x384xbf16> to vector<4x384xbf16>
    %cst_49 = arith.constant dense<0.000000e+00> : vector<8x384xf32>
    %58 = tpu.matmul %55, %57, %cst_49 {dimension_numbers = #tpu.dot_dimension_numbers<[1], [0], [0], [1], [0, 0, 1, 1], [], []>} : vector<8x4xbf16>, vector<4x384xbf16>, vector<8x384xf32> -> vector<8x384xf32>
    %59 = arith.addf %53, %58 : vector<8x384xf32>
    %c0_50 = arith.constant 0 : index
    %c0_51 = arith.constant 0 : index
    %60 = vector.load %arg4[%c0_50, %c0_51] : memref<8x3xf32, #tpu.memory_space<vmem>>, vector<8x1xf32>
    %61 = vector.broadcast %60 : vector<8x1xf32> to vector<8x384xf32>
    %62 = arith.addf %59, %61 : vector<8x384xf32>
    %cst_52 = arith.constant 0.000000e+00 : f32
    %63 = vector.broadcast %cst_52 : f32 to vector<8x384xf32>
    %64 = arith.cmpf ogt, %62, %63 : vector<8x384xf32>
    %cst_53 = arith.constant 2.000000e-01 : f32
    %65 = vector.broadcast %cst_53 : f32 to vector<8x384xf32>
    %66 = arith.mulf %65, %62 : vector<8x384xf32>
    %67 = arith.select %64, %62, %66 : vector<8x384xi1>, vector<8x384xf32>
    %c0_i32_54 = arith.constant 0 : i32
    %68 = arith.cmpi eq, %arg0, %c0_i32_54 : i32
    %69 = arith.extui %68 : i1 to i32
    %c0_i32_55 = arith.constant 0 : i32
    %70 = arith.cmpi ne, %69, %c0_i32_55 : i32
    scf.if %70 {
      %c0_60 = arith.constant 0 : index
      %c0_61 = arith.constant 0 : index
      %79 = vector.load %arg5[%c0_60, %c0_61] : memref<1x384xf32, #tpu.memory_space<vmem>>, vector<1x384xf32>
      %80 = vector.broadcast %79 : vector<1x384xf32> to vector<8x384xf32>
      %81 = arith.mulf %67, %80 : vector<8x384xf32>
      %c0_62 = arith.constant 0 : index
      %c0_63 = arith.constant 0 : index
      %82 = vector.load %arg7[%c0_62, %c0_63] : memref<8x1xf32, #tpu.memory_space<vmem>>, vector<8x1xf32>
      %cst_64 = arith.constant dense<0.000000e+00> : vector<8xf32>
      %83 = vector.multi_reduction <add>, %81, %cst_64 [1] : vector<8x384xf32> to vector<8xf32>
      %84 = vector.shape_cast %83 : vector<8xf32> to vector<8x1xf32>
      %85 = arith.addf %82, %84 : vector<8x1xf32>
      %c0_65 = arith.constant 0 : index
      %c0_66 = arith.constant 0 : index
      %86 = vector.load %arg7[%c0_65, %c0_66] : memref<8x1xf32, #tpu.memory_space<vmem>>, vector<8x1xf32>
      tpu.vector_store %arg7[%c0_65, %c0_66], %85 {strides = array<i32>} : memref<8x1xf32, #tpu.memory_space<vmem>>, vector<8x1xf32>,
      %c0_67 = arith.constant 0 : index
      %c0_68 = arith.constant 0 : index
      %87 = vector.load %arg8[%c0_67, %c0_68] : memref<8x1xf32, #tpu.memory_space<vmem>>, vector<8x1xf32>
      %88 = arith.mulf %81, %81 : vector<8x384xf32>
      %cst_69 = arith.constant dense<0.000000e+00> : vector<8xf32>
      %89 = vector.multi_reduction <add>, %88, %cst_69 [1] : vector<8x384xf32> to vector<8xf32>
      %90 = vector.shape_cast %89 : vector<8xf32> to vector<8x1xf32>
      %91 = arith.addf %87, %90 : vector<8x1xf32>
      %c0_70 = arith.constant 0 : index
      %c0_71 = arith.constant 0 : index
      %92 = vector.load %arg8[%c0_70, %c0_71] : memref<8x1xf32, #tpu.memory_space<vmem>>, vector<8x1xf32>
      tpu.vector_store %arg8[%c0_70, %c0_71], %91 {strides = array<i32>} : memref<8x1xf32, #tpu.memory_space<vmem>>, vector<8x1xf32>,
    } else {
    }
    %c1_i32 = arith.constant 1 : i32
    %71 = arith.cmpi eq, %arg0, %c1_i32 : i32
    %c0_i32_56 = arith.constant 0 : i32
    %72 = arith.cmpi eq, %arg1, %c0_i32_56 : i32
    %73 = arith.andi %71, %72 : i1
    %74 = arith.extui %73 : i1 to i32
    %c0_i32_57 = arith.constant 0 : i32
    %75 = arith.cmpi ne, %74, %c0_i32_57 : i32
    scf.if %75 {
      %c0_60 = arith.constant 0 : index
      %c0_61 = arith.constant 0 : index
      %79 = vector.load %arg7[%c0_60, %c0_61] : memref<8x1xf32, #tpu.memory_space<vmem>>, vector<8x1xf32>
      %cst_62 = arith.constant 0.001953125 : f32
      %80 = vector.broadcast %cst_62 : f32 to vector<8x1xf32>
      %81 = arith.mulf %79, %80 : vector<8x1xf32>
      %c0_63 = arith.constant 0 : index
      %c0_64 = arith.constant 0 : index
      %82 = vector.load %arg8[%c0_63, %c0_64] : memref<8x1xf32, #tpu.memory_space<vmem>>, vector<8x1xf32>
      %cst_65 = arith.constant 0.001953125 : f32
      %83 = vector.broadcast %cst_65 : f32 to vector<8x1xf32>
      %84 = arith.mulf %82, %83 : vector<8x1xf32>
      %85 = arith.mulf %81, %81 : vector<8x1xf32>
      %86 = arith.subf %84, %85 : vector<8x1xf32>
      %cst_66 = arith.constant 0.000000e+00 : f32
      %87 = vector.broadcast %cst_66 : f32 to vector<8x1xf32>
      %88 = arith.maximumf %86, %87 : vector<8x1xf32>
      %c0_67 = arith.constant 0 : index
      %c1_68 = arith.constant 1 : index
      %89 = vector.load %arg4[%c0_67, %c1_68] : memref<8x3xf32, #tpu.memory_space<vmem>>, vector<8x1xf32>
      %cst_69 = arith.constant 9.99999974E-6 : f32
      %90 = vector.broadcast %cst_69 : f32 to vector<8x1xf32>
      %91 = arith.addf %88, %90 : vector<8x1xf32>
      %92 = math.rsqrt %91 : vector<8x1xf32>
      %93 = arith.mulf %89, %92 : vector<8x1xf32>
      %c0_70 = arith.constant 0 : index
      %c0_71 = arith.constant 0 : index
      %94 = vector.load %arg9[%c0_70, %c0_71] : memref<8x1xf32, #tpu.memory_space<vmem>>, vector<8x1xf32>
      tpu.vector_store %arg9[%c0_70, %c0_71], %93 {strides = array<i32>} : memref<8x1xf32, #tpu.memory_space<vmem>>, vector<8x1xf32>,
      %c0_72 = arith.constant 0 : index
      %c2_73 = arith.constant 2 : index
      %95 = vector.load %arg4[%c0_72, %c2_73] : memref<8x3xf32, #tpu.memory_space<vmem>>, vector<8x1xf32>
      %96 = arith.mulf %81, %93 : vector<8x1xf32>
      %97 = arith.subf %95, %96 : vector<8x1xf32>
      %c0_74 = arith.constant 0 : index
      %c0_75 = arith.constant 0 : index
      %98 = vector.load %arg10[%c0_74, %c0_75] : memref<8x1xf32, #tpu.memory_space<vmem>>, vector<8x1xf32>
      tpu.vector_store %arg10[%c0_74, %c0_75], %97 {strides = array<i32>} : memref<8x1xf32, #tpu.memory_space<vmem>>, vector<8x1xf32>,
    } else {
    }
    %c1_i32_58 = arith.constant 1 : i32
    %76 = arith.cmpi eq, %arg0, %c1_i32_58 : i32
    %77 = arith.extui %76 : i1 to i32
    %c0_i32_59 = arith.constant 0 : i32
    %78 = arith.cmpi ne, %77, %c0_i32_59 : i32
    scf.if %78 {
      %c0_60 = arith.constant 0 : index
      %c0_61 = arith.constant 0 : index
      %79 = vector.load %arg9[%c0_60, %c0_61] : memref<8x1xf32, #tpu.memory_space<vmem>>, vector<8x1xf32>
      %80 = vector.broadcast %79 : vector<8x1xf32> to vector<8x384xf32>
      %81 = arith.mulf %67, %80 : vector<8x384xf32>
      %c0_62 = arith.constant 0 : index
      %c0_63 = arith.constant 0 : index
      %82 = vector.load %arg10[%c0_62, %c0_63] : memref<8x1xf32, #tpu.memory_space<vmem>>, vector<8x1xf32>
      %83 = vector.broadcast %82 : vector<8x1xf32> to vector<8x384xf32>
      %84 = arith.addf %81, %83 : vector<8x384xf32>
      %c0_64 = arith.constant 0 : index
      %c0_65 = arith.constant 0 : index
      %c0_66 = arith.constant 0 : index
      %85 = vector.load %arg6[%c0_64, %c0_65, %c0_66] : memref<1x8x384xf32, #tpu.memory_space<vmem>>, vector<1x8x384xf32>
      %86 = vector.shape_cast %85 : vector<1x8x384xf32> to vector<8x384xf32>
      %87 = vector.shape_cast %84 : vector<8x384xf32> to vector<1x8x384xf32>
      tpu.vector_store %arg6[%c0_64, %c0_65, %c0_66], %87 {strides = array<i32>} : memref<1x8x384xf32, #tpu.memory_space<vmem>>, vector<1x8x384xf32>,
    } else {
    }
    return
  }
  func.func @transform_0(%arg0: i32, %arg1: i32) -> (i32, i32, i32) {
    %c0_i32 = arith.constant 0 : i32
    %c0_i32_0 = arith.constant 0 : i32
    %c0_i32_1 = arith.constant 0 : i32
    return %arg1, %c0_i32, %c0_i32_0 : i32, i32, i32
  }
  func.func @transform_1(%arg0: i32, %arg1: i32) -> (i32, i32, i32) {
    %c0_i32 = arith.constant 0 : i32
    %c0_i32_0 = arith.constant 0 : i32
    %c0_i32_1 = arith.constant 0 : i32
    %c0_i32_2 = arith.constant 0 : i32
    return %c0_i32, %c0_i32_0, %c0_i32_1 : i32, i32, i32
  }
  func.func @transform_2(%arg0: i32, %arg1: i32) -> (i32, i32) {
    %c0_i32 = arith.constant 0 : i32
    %c0_i32_0 = arith.constant 0 : i32
    %c0_i32_1 = arith.constant 0 : i32
    return %c0_i32, %c0_i32_0 : i32, i32
  }
  func.func @transform_3(%arg0: i32, %arg1: i32) -> (i32, i32) {
    %c0_i32 = arith.constant 0 : i32
    %c0_i32_0 = arith.constant 0 : i32
    %c0_i32_1 = arith.constant 0 : i32
    return %c0_i32, %c0_i32_0 : i32, i32
  }
  func.func @transform_4(%arg0: i32, %arg1: i32) -> (i32, i32, i32) {
    %0 = arith.muli %arg1, %arg0 : i32
    %c0_i32 = arith.constant 0 : i32
    %c0_i32_0 = arith.constant 0 : i32
    %c0_i32_1 = arith.constant 0 : i32
    return %0, %c0_i32, %c0_i32_0 : i32, i32, i32
  }
}

</mosaic_0001>

<llo_original>
// kernel: unet_block_forward.1
$region0: #{unet_block_forward.1}
  #allocation0 [shape = 'u32[]', space=smem, size = 0x4, offset = 0x4, fixed_abs, tag = 'smem constant byte address 0x4 - core index']
  #allocation1 [shape = 'u32[144,128]{1,0:T(1,128)}', space=vmem, size = 0x12000, scoped, tag = 'internal scratch']
  #allocation2 [shape = 'f32[8,1]{1,0:T(8,128)}', space=vmem, size = 0x1000, scoped, tag = 'scratch operand']
  #allocation3 [shape = 'f32[8,1]{1,0:T(8,128)}', space=vmem, size = 0x1000, scoped, tag = 'scratch operand']
  #allocation4 [shape = 'f32[8,1]{1,0:T(8,128)}', space=vmem, size = 0x1000, scoped, tag = 'scratch operand']
  #allocation5 [shape = 'f32[8,1]{1,0:T(8,128)}', space=vmem, size = 0x1000, scoped, tag = 'scratch operand']
  %s0 = inlined_call_operand.vmem [shape: bf16[2,4,512], index: 0, kind: input, shape index: {}]
  %s1 = inlined_call_operand.vmem [shape: bf16[9,8,4], index: 1, kind: input, shape index: {}]
  %s2 = inlined_call_operand.vmem [shape: f32[8,3], index: 2, kind: input, shape index: {}]
  %s3 = inlined_call_operand.vmem [shape: f32[1,384], index: 3, kind: input, shape index: {}]
  %s4 = inlined_call_operand.vmem [shape: f32[2,8,384], index: 4, kind: output, shape index: {}]
  %s5 = sld [smem:[#allocation0]]
  $region65: #{unet_block_forward.1} parent=0
    _
  %s7 = ssub.s32 1, %s5
  %s8 = scalar_select 0, %s7, %s5
  loop: start=0, step=1, limit=6
  $region2: #{unet_block_forward.1} parent=0 // loop_pre_header
    _
  $region3: #{unet_block_forward.1} parent=0 // loop_header
    %s10 = sphi 0, %s14
    %p11 = scmp.ge.s32.totalorder %s10, 6
    %s17 = sphi 0, %s29
    %s18 = sphi 0, %s25
    %s19 = sphi 0, %s17
    %s20 = sphi 0, %s18
    %s21 = sphi 0, %s19
    %s22 = sphi 0, %s20
    %s32 = sphi 0, %s34
    %s35 = sphi 0, %s32
    %s36 = sphi 0, %s35
    %s52 = sphi 0, %s36
    %s56 = sphi 0, %s56
    %s58 = sphi 0, %s56
    %s59 = sphi 0, %s58
    %s73 = sphi 0, %s59
    %s77 = sphi 0, %s77
    %s79 = sphi 0, %s77
    %s80 = sphi 0, %s79
    %s94 = sphi 0, %s80
    %s98 = sphi 0, %s98
    %s100 = sphi 0, %s98
    %s101 = sphi 0, %s100
    %s115 = sphi 0, %s101
    %s123 = sphi 0, %s125
    %s126 = sphi 0, %s123
    %s127 = sphi 0, %s126
    %s143 = sphi 0, %s127
  $region4: #{unet_block_forward.1} parent=0 // loop_header_branch
    %13 = sbr.rel (%p11) target = $region8
  $region5: #{unet_block_forward.1} parent=0 // loop_body
    %s15 = ssub.s32 %s10, 1
    %s16 = ssub.s32 %s10, 2
    %s23 = sadd.s32 1, %s18
    %p24 = scmp.ge.s32.totalorder %s23, 2
    %s25 = scalar_select %p24, 0, %s23
    %s26 = sadd.s32 1, %s17
    %s27 = scalar_select %p24, %s26, %s17
    %p28 = scmp.ge.s32.totalorder %s27, 2
    %s29 = scalar_select %p28, 0, %s27
    %s30 = ssub.s32 %s18, %s25
    %p31 = scmp.eq.s32.totalorder %s30, 0
    %s33 = sadd.s32 %s32, 1
    %s34 = scalar_select %p31, %s32, %s33
    %p37 = pneg %p31
    %p38 = scmp.eq.s32.totalorder %s10, 3
    %p39 = por %p37, %p38
    %p40 = scmp.ne.s32.totalorder %s32, %s35
    %p41 = scmp.eq.s32.totalorder %s10, 0
    %p42 = por %p40, %p41
    %p43 = scmp.ne.s32.totalorder %s32, %s35
    %p44 = scmp.eq.s32.totalorder %s15, 3
    %p45 = por %p43, %p44
    %p46 = scmp.ne.s32.totalorder %s35, %s36
    %p47 = scmp.eq.s32.totalorder %s15, 0
    %p48 = por %p46, %p47
    %p49 = scmp.ne.s32.totalorder %s35, %s36
    %p50 = scmp.eq.s32.totalorder %s16, 3
    %p51 = por %p49, %p50
    %p53 = scmp.ne.s32.totalorder %s36, %s52
    %p54 = scmp.eq.s32.totalorder %s16, 0
    %p55 = por %p53, %p54
    %s57 = sadd.s32 %s56, 1
    %p60 = scmp.eq.s32.totalorder %s10, 3
    %p61 = scmp.ne.s32.totalorder %s56, %s58
    %p62 = scmp.eq.s32.totalorder %s10, 0
    %p63 = por %p61, %p62
    %p64 = scmp.ne.s32.totalorder %s56, %s58
    %p65 = scmp.eq.s32.totalorder %s15, 3
    %p66 = por %p64, %p65
    %p67 = scmp.ne.s32.totalorder %s58, %s59
    %p68 = scmp.eq.s32.totalorder %s15, 0
    %p69 = por %p67, %p68
    %p70 = scmp.ne.s32.totalorder %s58, %s59
    %p71 = scmp.eq.s32.totalorder %s16, 3
    %p72 = por %p70, %p71
    %p74 = scmp.ne.s32.totalorder %s59, %s73
    %p75 = scmp.eq.s32.totalorder %s16, 0
    %p76 = por %p74, %p75
    %s78 = sadd.s32 %s77, 1
    %p81 = scmp.eq.s32.totalorder %s10, 3
    %p82 = scmp.ne.s32.totalorder %s77, %s79
    %p83 = scmp.eq.s32.totalorder %s10, 0
    %p84 = por %p82, %p83
    %p85 = scmp.ne.s32.totalorder %s77, %s79
    %p86 = scmp.eq.s32.totalorder %s15, 3
    %p87 = por %p85, %p86
    %p88 = scmp.ne.s32.totalorder %s79, %s80
    %p89 = scmp.eq.s32.totalorder %s15, 0
    %p90 = por %p88, %p89
    %p91 = scmp.ne.s32.totalorder %s79, %s80
    %p92 = scmp.eq.s32.totalorder %s16, 3
    %p93 = por %p91, %p92
    %p95 = scmp.ne.s32.totalorder %s80, %s94
    %p96 = scmp.eq.s32.totalorder %s16, 0
    %p97 = por %p95, %p96
    %s99 = sadd.s32 %s98, 1
    %p102 = scmp.eq.s32.totalorder %s10, 3
    %p103 = scmp.ne.s32.totalorder %s98, %s100
    %p104 = scmp.eq.s32.totalorder %s10, 0
    %p105 = por %p103, %p104
    %p106 = scmp.ne.s32.totalorder %s98, %s100
    %p107 = scmp.eq.s32.totalorder %s15, 3
    %p108 = por %p106, %p107
    %p109 = scmp.ne.s32.totalorder %s100, %s101
    %p110 = scmp.eq.s32.totalorder %s15, 0
    %p111 = por %p109, %p110
    %p112 = scmp.ne.s32.totalorder %s100, %s101
    %p113 = scmp.eq.s32.totalorder %s16, 3
    %p114 = por %p112, %p113
    %p116 = scmp.ne.s32.totalorder %s101, %s115
    %p117 = scmp.eq.s32.totalorder %s16, 0
    %p118 = por %p116, %p117
    %s119 = smul.u32 %s18, %s17
    %s120 = smul.u32 %s25, %s29
    %s121 = ssub.s32 %s119, %s120
    %p122 = scmp.eq.s32.totalorder %s121, 0
    %s124 = sadd.s32 %s123, 1
    %s125 = scalar_select %p122, %s123, %s124
    %p128 = pneg %p122
    %p129 = scmp.eq.s32.totalorder %s10, 3
    %p130 = por %p128, %p129
    %p131 = scmp.ne.s32.totalorder %s123, %s126
    %p132 = scmp.eq.s32.totalorder %s10, 0
    %p133 = por %p131, %p132
    %p134 = scmp.ne.s32.totalorder %s123, %s126
    %p135 = scmp.eq.s32.totalorder %s15, 3
    %p136 = por %p134, %p135
    %p137 = scmp.ne.s32.totalorder %s126, %s127
    %p138 = scmp.eq.s32.totalorder %s15, 0
    %p139 = por %p137, %p138
    %p140 = scmp.ne.s32.totalorder %s126, %s127
    %p141 = scmp.eq.s32.totalorder %s16, 3
    %p142 = por %p140, %p141
    %p144 = scmp.ne.s32.totalorder %s127, %s143
    %p145 = scmp.eq.s32.totalorder %s16, 0
    %p146 = por %p144, %p145
    %p147 = scmp.le.s32.totalorder 1, %s10
    %p148 = scmp.lt.s32.totalorder %s10, 5
    %p149 = pnand %p147, %p148
    %p150 = pneg %p149
    // Predicated region
    $region9: #{unet_block_forward.1} parent=5 // pred_check
      _
    $region10: #{unet_block_forward.1} parent=5 // pred_check_branch
      %152 = sbr.rel (%p149) target = $region12
    $region11: #{unet_block_forward.1} parent=5 // pred_region
      %s153 = ssub.s32 %s10, 1
      // Predicated region
      $region13: #{unet_block_forward.1} parent=11 // pred_check
        %p154 = pneg %p69
      $region14: #{unet_block_forward.1} parent=11 // pred_check_branch
        %156 = sbr.rel (%p154) target = $region16
      $region15: #{unet_block_forward.1} parent=11 // pred_region
        _
      $region16: #{unet_block_forward.1} parent=11 // pred_fallthru
        _
      // Predicated region
      $region17: #{unet_block_forward.1} parent=11 // pred_check
        %p157 = pneg %p90
      $region18: #{unet_block_forward.1} parent=11 // pred_check_branch
        %159 = sbr.rel (%p157) target = $region20
      $region19: #{unet_block_forward.1} parent=11 // pred_region
        _
      $region20: #{unet_block_forward.1} parent=11 // pred_fallthru
        _
      // Predicated region
      $region21: #{unet_block_forward.1} parent=11 // pred_check
        %p160 = pneg %p111
      $region22: #{unet_block_forward.1} parent=11 // pred_check_branch
        %162 = sbr.rel (%p160) target = $region24
      $region23: #{unet_block_forward.1} parent=11 // pred_region
        _
      $region24: #{unet_block_forward.1} parent=11 // pred_fallthru
        _
    $region12: #{unet_block_forward.1} parent=5 // pred_fallthru
      _
    %p163 = scmp.lt.s32.totalorder %s10, 4
    // Predicated region
    $region25: #{unet_block_forward.1} parent=5 // pred_check
      %p164 = pneg %p163
    $region26: #{unet_block_forward.1} parent=5 // pred_check_branch
      %166 = sbr.rel (%p164) target = $region28
    $region27: #{unet_block_forward.1} parent=5 // pred_region
      // Predicated region
      $region29: #{unet_block_forward.1} parent=27 // pred_check
        %p167 = pneg %p42
      $region30: #{unet_block_forward.1} parent=27 // pred_check_branch
        %169 = sbr.rel (%p167) target = $region32
      $region31: #{unet_block_forward.1} parent=27 // pred_region
        %p170 = scmp.lt.s32.totalorder %s18, 1
        %s171 = scalar_select %p170, %s18, 1
        %s172 = smul.addr %s171, 4
        %s173 = smul.addr %s172, 2
        %s174 = scalar_lea.vmem %s0, %s173
      $region32: #{unet_block_forward.1} parent=27 // pred_fallthru
        _
    $region28: #{unet_block_forward.1} parent=5 // pred_fallthru
      _
    %p175 = scmp.le.s32.totalorder 1, %s10
    %p176 = scmp.lt.s32.totalorder %s10, 5
    %p177 = pnand %p175, %p176
    %p178 = pneg %p177
    // Predicated region
    $region33: #{unet_block_forward.1} parent=5 // pred_check
      _
    $region34: #{unet_block_forward.1} parent=5 // pred_check_branch
      %180 = sbr.rel (%p177) target = $region36
    $region35: #{unet_block_forward.1} parent=5 // pred_region
      %s181 = ssub.s32 %s10, 1
      %p182 = scmp.lt.s32.totalorder %s20, 1
      %s183 = scalar_select %p182, %s20, 1
      %s184 = smul.addr %s183, 4
      %s185 = smul.addr %s184, 2
      %s186 = scalar_lea.vmem %s0, %s185
      %p187 = pneg %p48
      %p188 = pneg %p45
      %p189 = pneg %p69
      %p190 = pneg %p66
      %p191 = pneg %p90
      %p192 = pneg %p87
      %p193 = pneg %p111
      %p194 = pneg %p108
      %p195 = pneg %p139
      %p196 = pneg %p136
      %s197 = smul.u32 %s20, %s19
      %p198 = scmp.lt.s32.totalorder %s197, 1
      %s199 = scalar_select %p198, %s197, 1
      %s200 = smul.addr %s199, 3
      %s201 = smul.addr %s200, 8
      %s202 = scalar_lea.vmem %s4, %s201
      %p203 = scmp.lt.s32.totalorder %s20, 1
      %s204 = scalar_select %p203, %s20, 1
      %s205 = smul.addr %s204, 4
      %s206 = smul.addr %s205, 2
      %s207 = scalar_lea.vmem %s0, %s206
      %s208 = smul.u32 %s20, %s19
      %p209 = scmp.lt.s32.totalorder %s208, 1
      %s210 = scalar_select %p209, %s208, 1
      %s211 = smul.addr %s210, 3
      %s212 = smul.addr %s211, 8
      %s213 = scalar_lea.vmem %s4, %s212
      %s214 = smul.u32 %s20, %s19
      %p216 = scmp.eq.s32.totalorder %s19, 0
      %p217 = scmp.eq.s32.totalorder %s20, 0
      %p218 = pnand %p216, %p217
      %p219 = pneg %p218
      // Predicated region
      $region37: #{unet_block_forward.1} parent=35 // pred_check
        _
      $region38: #{unet_block_forward.1} parent=35 // pred_check_branch
        %221 = sbr.rel (%p218) target = $region40
      $region39: #{unet_block_forward.1} parent=35 // pred_region
        %vm222 = vcmask 7168
        %223 = vst.msk [vmem:[#allocation2] sm:$0xff] %vm222, 0.0
        %224 = vst.msk [vmem:[#allocation3] sm:$0xff] %vm222, 0.0
      $region40: #{unet_block_forward.1} parent=35 // pred_fallthru
        _
      %v225 = vld [vmem:[%s1] sm:$0xf]
      %v226 = vld [vmem:[%s207] sm:$0x3f]
      %s227 = scalar_lea.vmem %s1, 4
      %v228 = vld [vmem:[%s227] sm:$0xf]
      %v229 = vld [vmem:[%s207] sm:$0xff]
      %v231 = vcombine.high %v229, %v229
      %v233 = vunpack.c.l.s4 1983009808
      %v234 = vunpack.c.0.s8 %v233
      %v235 = vlaneseq
      %v236 = vshrl.u32 %v235, 7
      %v237 = vsub.s32 %v234, %v236
      %v238 = vrot.slane %v229, %v237
      %v240 = vunpack.c.l.s4 1983009808
      %v241 = vunpack.c.0.s8 %v240
      %v242 = vlaneseq
      %v243 = vshrl.u32 %v242, 7
      %v244 = vsub.s32 %v241, %v243
      %v245 = vrot.slane %v231, %v244
      %v246 = vcombine.high %v238, %v238
      %v247 = vcombine.high %v245, %v245
      %248 = vrot.lane.b32.xlu0 %v238, 127
      %v249 = vpop.permute.xlu0 %248
      %250 = vrot.lane.b32.xlu0 %v246, 127
      %v251 = vpop.permute.xlu0 %250
      %252 = vrot.lane.b32.xlu0 %v245, 127
      %v253 = vpop.permute.xlu0 %252
      %254 = vrot.lane.b32.xlu0 %v247, 127
      %v255 = vpop.permute.xlu0 %254
      %vm256 = vcmask 1039360
      %v257 = vsel %vm256, %v249, %v251
      %v258 = vsel %vm256, %v251, %v253
      %v259 = vsel %vm256, %v253, %v255
      %vm260 = vcmask 31744
      %v262 = vsel %vm260, %v228, 0
      %vm264 = vcmask 1041408
      %v266 = vsel %vm264, %v257, 0
      %v269 = vsel %vm264, %v258, 0
      %v272 = vsel %vm264, %v259, 0
      %274 = vmatprep.subr.bf16.mxu0 %v269
      %275 = vmatpush1.bf16.msra.mxu0 %v266
      %276 = vmatprep.subr.bf16.mxu0 0
      %277 = vmatpush1.bf16.msra.mxu0 0
      %278 = vmatprep.subr.bf16.mxu0 0
      %279 = vmatpush1.bf16.msra.mxu0 0
      %280 = vmatprep.subr.bf16.mxu0 0
      %281 = vmatpush1.bf16.msra.mxu0 0
      %282 = vmatprep.subr.bf16.mxu0 0
      %283 = vmatpush1.bf16.msra.mxu0 0
      %284 = vmatprep.subr.bf16.mxu0 0
      %285 = vmatpush1.bf16.msra.mxu0 0
      %286 = vmatprep.subr.bf16.mxu0 0
      %287 = vmatpush1.bf16.msra.mxu0 0
      %288 = vmatprep.subr.bf16.mxu0 0
      %289 = vmatpush1.bf16.msra.mxu0 0
      %290 = vmatprep.subr.bf16.mxu0 0
      %291 = vmatpush1.bf16.msra.mxu0 0
      %292 = vmatprep.subr.bf16.mxu0 0
      %293 = vmatpush1.bf16.msra.mxu0 0
      %294 = vmatprep.subr.bf16.mxu0 0
      %295 = vmatpush1.bf16.msra.mxu0 0
      %296 = vmatprep.subr.bf16.mxu0 0
      %297 = vmatpush1.bf16.msra.mxu0 0
      %298 = vmatprep.subr.bf16.mxu0 0
      %299 = vmatpush1.bf16.msra.mxu0 0
      %300 = vmatprep.subr.bf16.mxu0 0
      %301 = vmatpush1.bf16.msra.mxu0 0
      %302 = vmatprep.subr.bf16.mxu0 0
      %303 = vmatpush1.bf16.msra.mxu0 0
      %304 = vmatprep.subr.bf16.mxu0 0
      %305 = vmatpush1.bf16.msra.mxu0 0
      %306 = vmatprep.mubr.bf16.mxu0 0
      %307 = vmatmul.mubr.bf16.gmra.mrb[0].mxu0 %v262
      %v308 = vpop.f32.mrb[0].mxu0
      %v309 = vadd.f32 0.0, %v308
      %v310 = vpop.f32.mrb[0].mxu0
      %v311 = vadd.f32 0.0, %v310
      %v312 = vpop.f32.mrb[0].mxu0
      %v313 = vpop.f32.mrb[0].mxu0
      %314 = vdwg.mxu0
      %315 = vmatprep.subr.bf16.mxu0 0
      %316 = vmatpush1.bf16.msra.mxu0 %v272
      %317 = vmatprep.subr.bf16.mxu0 0
      %318 = vmatpush1.bf16.msra.mxu0 0
      %319 = vmatprep.subr.bf16.mxu0 0
      %320 = vmatpush1.bf16.msra.mxu0 0
      %321 = vmatprep.subr.bf16.mxu0 0
      %322 = vmatpush1.bf16.msra.mxu0 0
      %323 = vmatprep.subr.bf16.mxu0 0
      %324 = vmatpush1.bf16.msra.mxu0 0
      %325 = vmatprep.subr.bf16.mxu0 0
      %326 = vmatpush1.bf16.msra.mxu0 0
      %327 = vmatprep.subr.bf16.mxu0 0
      %328 = vmatpush1.bf16.msra.mxu0 0
      %329 = vmatprep.subr.bf16.mxu0 0
      %330 = vmatpush1.bf16.msra.mxu0 0
      %331 = vmatprep.subr.bf16.mxu0 0
      %332 = vmatpush1.bf16.msra.mxu0 0
      %333 = vmatprep.subr.bf16.mxu0 0
      %334 = vmatpush1.bf16.msra.mxu0 0
      %335 = vmatprep.subr.bf16.mxu0 0
      %336 = vmatpush1.bf16.msra.mxu0 0
      %337 = vmatprep.subr.bf16.mxu0 0
      %338 = vmatpush1.bf16.msra.mxu0 0
      %339 = vmatprep.subr.bf16.mxu0 0
      %340 = vmatpush1.bf16.msra.mxu0 0
      %341 = vmatprep.subr.bf16.mxu0 0
      %342 = vmatpush1.bf16.msra.mxu0 0
      %343 = vmatprep.subr.bf16.mxu0 0
      %344 = vmatpush1.bf16.msra.mxu0 0
      %345 = vmatprep.subr.bf16.mxu0 0
      %346 = vmatpush1.bf16.msra.mxu0 0
      %347 = vmatprep.mubr.bf16.mxu0 0
      %348 = vmatmul.mubr.bf16.gmra.mrb[0].mxu0 %v262
      %v349 = vpop.f32.mrb[0].mxu0
      %v350 = vadd.f32 0.0, %v349
      %v351 = vpop.f32.mrb[0].mxu0
      %v352 = vpop.f32.mrb[0].mxu0
      %v353 = vpop.f32.mrb[0].mxu0
      %354 = vdwg.mxu0
      %v356 = vcombine.high %v226, %v226
      %v358 = vunpack.c.l.s4 1983009808
      %v359 = vunpack.c.0.s8 %v358
      %v360 = vlaneseq
      %v361 = vshrl.u32 %v360, 7
      %v362 = vsub.s32 %v359, %v361
      %v363 = vrot.slane %v226, %v362
      %v365 = vunpack.c.l.s4 1983009808
      %v366 = vunpack.c.0.s8 %v365
      %v367 = vlaneseq
      %v368 = vshrl.u32 %v367, 7
      %v369 = vsub.s32 %v366, %v368
      %v370 = vrot.slane %v356, %v369
      %v371 = vcombine.high %v363, %v363
      %v373 = vsel %vm260, %v225, 0
      %v376 = vsel %vm264, %v363, 0
      %v379 = vsel %vm264, %v371, 0
      %v382 = vsel %vm264, %v370, 0
      %384 = vmatprep.subr.bf16.mxu0 %v379
      %385 = vmatpush1.bf16.msra.mxu0 %v376
      %386 = vmatprep.subr.bf16.mxu0 0
      %387 = vmatpush1.bf16.msra.mxu0 0
      %388 = vmatprep.subr.bf16.mxu0 0
      %389 = vmatpush1.bf16.msra.mxu0 0
      %390 = vmatprep.subr.bf16.mxu0 0
      %391 = vmatpush1.bf16.msra.mxu0 0
      %392 = vmatprep.subr.bf16.mxu0 0
      %393 = vmatpush1.bf16.msra.mxu0 0
      %394 = vmatprep.subr.bf16.mxu0 0
      %395 = vmatpush1.bf16.msra.mxu0 0
      %396 = vmatprep.subr.bf16.mxu0 0
      %397 = vmatpush1.bf16.msra.mxu0 0
      %398 = vmatprep.subr.bf16.mxu0 0
      %399 = vmatpush1.bf16.msra.mxu0 0
      %400 = vmatprep.subr.bf16.mxu0 0
      %401 = vmatpush1.bf16.msra.mxu0 0
      %402 = vmatprep.subr.bf16.mxu0 0
      %403 = vmatpush1.bf16.msra.mxu0 0
      %404 = vmatprep.subr.bf16.mxu0 0
      %405 = vmatpush1.bf16.msra.mxu0 0
      %406 = vmatprep.subr.bf16.mxu0 0
      %407 = vmatpush1.bf16.msra.mxu0 0
      %408 = vmatprep.subr.bf16.mxu0 0
      %409 = vmatpush1.bf16.msra.mxu0 0
      %410 = vmatprep.subr.bf16.mxu0 0
      %411 = vmatpush1.bf16.msra.mxu0 0
      %412 = vmatprep.subr.bf16.mxu0 0
      %413 = vmatpush1.bf16.msra.mxu0 0
      %414 = vmatprep.subr.bf16.mxu0 0
      %415 = vmatpush1.bf16.msra.mxu0 0
      %416 = vmatprep.mubr.bf16.mxu0 0
      %417 = vmatmul.mubr.bf16.gmra.mrb[0].mxu0 %v373
      %v418 = vpop.f32.mrb[0].mxu0
      %v419 = vadd.f32 %v309, %v418
      %v420 = vpop.f32.mrb[0].mxu0
      %v421 = vadd.f32 %v311, %v420
      %v422 = vpop.f32.mrb[0].mxu0
      %v423 = vpop.f32.mrb[0].mxu0
      %424 = vdwg.mxu0
      %425 = vmatprep.subr.bf16.mxu0 0
      %426 = vmatpush1.bf16.msra.mxu0 %v382
      %427 = vmatprep.subr.bf16.mxu0 0
      %428 = vmatpush1.bf16.msra.mxu0 0
      %429 = vmatprep.subr.bf16.mxu0 0
      %430 = vmatpush1.bf16.msra.mxu0 0
      %431 = vmatprep.subr.bf16.mxu0 0
      %432 = vmatpush1.bf16.msra.mxu0 0
      %433 = vmatprep.subr.bf16.mxu0 0
      %434 = vmatpush1.bf16.msra.mxu0 0
      %435 = vmatprep.subr.bf16.mxu0 0
      %436 = vmatpush1.bf16.msra.mxu0 0
      %437 = vmatprep.subr.bf16.mxu0 0
      %438 = vmatpush1.bf16.msra.mxu0 0
      %439 = vmatprep.subr.bf16.mxu0 0
      %440 = vmatpush1.bf16.msra.mxu0 0
      %441 = vmatprep.subr.bf16.mxu0 0
      %442 = vmatpush1.bf16.msra.mxu0 0
      %443 = vmatprep.subr.bf16.mxu0 0
      %444 = vmatpush1.bf16.msra.mxu0 0
      %445 = vmatprep.subr.bf16.mxu0 0
      %446 = vmatpush1.bf16.msra.mxu0 0
      %447 = vmatprep.subr.bf16.mxu0 0
      %448 = vmatpush1.bf16.msra.mxu0 0
      %449 = vmatprep.subr.bf16.mxu0 0
      %450 = vmatpush1.bf16.msra.mxu0 0
      %451 = vmatprep.subr.bf16.mxu0 0
      %452 = vmatpush1.bf16.msra.mxu0 0
      %453 = vmatprep.subr.bf16.mxu0 0
      %454 = vmatpush1.bf16.msra.mxu0 0
      %455 = vmatprep.subr.bf16.mxu0 0
      %456 = vmatpush1.bf16.msra.mxu0 0
      %457 = vmatprep.mubr.bf16.mxu0 0
      %458 = vmatmul.mubr.bf16.gmra.mrb[0].mxu0 %v373
      %v459 = vpop.f32.mrb[0].mxu0
      %v460 = vadd.f32 %v350, %v459
      %v461 = vpop.f32.mrb[0].mxu0
      %v462 = vpop.f32.mrb[0].mxu0
      %v463 = vpop.f32.mrb[0].mxu0
      %464 = vdwg.mxu0
      %s465 = scalar_lea.vmem %s1, 8
      %v466 = vld [vmem:[%s465] sm:$0xf]
      %v467 = vld [vmem:[%s207] sm:$0xff]
      %v469 = vcombine.high %v467, %v467
      %v471 = vunpack.c.l.s4 1983009808
      %v472 = vunpack.c.0.s8 %v471
      %v473 = vlaneseq
      %v474 = vshrl.u32 %v473, 7
      %v475 = vsub.s32 %v472, %v474
      %v476 = vrot.slane %v467, %v475
      %v478 = vunpack.c.l.s4 1983009808
      %v479 = vunpack.c.0.s8 %v478
      %v480 = vlaneseq
      %v481 = vshrl.u32 %v480, 7
      %v482 = vsub.s32 %v479, %v481
      %v483 = vrot.slane %v469, %v482
      %v484 = vcombine.high %v476, %v476
      %v485 = vcombine.high %v483, %v483
      %486 = vrot.lane.b32.xlu0 %v476, 126
      %v487 = vpop.permute.xlu0 %486
      %488 = vrot.lane.b32.xlu0 %v484, 126
      %v489 = vpop.permute.xlu0 %488
      %490 = vrot.lane.b32.xlu0 %v483, 126
      %v491 = vpop.permute.xlu0 %490
      %492 = vrot.lane.b32.xlu0 %v485, 126
      %v493 = vpop.permute.xlu0 %492
      %vm494 = vcmask 1031168
      %v495 = vsel %vm494, %v487, %v489
      %v496 = vsel %vm494, %v489, %v491
      %v497 = vsel %vm494, %v491, %v493
      %v499 = vsel %vm260, %v466, 0
      %v502 = vsel %vm264, %v495, 0
      %v505 = vsel %vm264, %v496, 0
      %v508 = vsel %vm264, %v497, 0
      %510 = vmatprep.subr.bf16.mxu0 %v505
      %511 = vmatpush1.bf16.msra.mxu0 %v502
      %512 = vmatprep.subr.bf16.mxu0 0
      %513 = vmatpush1.bf16.msra.mxu0 0
      %514 = vmatprep.subr.bf16.mxu0 0
      %515 = vmatpush1.bf16.msra.mxu0 0
      %516 = vmatprep.subr.bf16.mxu0 0
      %517 = vmatpush1.bf16.msra.mxu0 0
      %518 = vmatprep.subr.bf16.mxu0 0
      %519 = vmatpush1.bf16.msra.mxu0 0
      %520 = vmatprep.subr.bf16.mxu0 0
      %521 = vmatpush1.bf16.msra.mxu0 0
      %522 = vmatprep.subr.bf16.mxu0 0
      %523 = vmatpush1.bf16.msra.mxu0 0
      %524 = vmatprep.subr.bf16.mxu0 0
      %525 = vmatpush1.bf16.msra.mxu0 0
      %526 = vmatprep.subr.bf16.mxu0 0
      %527 = vmatpush1.bf16.msra.mxu0 0
      %528 = vmatprep.subr.bf16.mxu0 0
      %529 = vmatpush1.bf16.msra.mxu0 0
      %530 = vmatprep.subr.bf16.mxu0 0
      %531 = vmatpush1.bf16.msra.mxu0 0
      %532 = vmatprep.subr.bf16.mxu0 0
      %533 = vmatpush1.bf16.msra.mxu0 0
      %534 = vmatprep.subr.bf16.mxu0 0
      %535 = vmatpush1.bf16.msra.mxu0 0
      %536 = vmatprep.subr.bf16.mxu0 0
      %537 = vmatpush1.bf16.msra.mxu0 0
      %538 = vmatprep.subr.bf16.mxu0 0
      %539 = vmatpush1.bf16.msra.mxu0 0
      %540 = vmatprep.subr.bf16.mxu0 0
      %541 = vmatpush1.bf16.msra.mxu0 0
      %542 = vmatprep.mubr.bf16.mxu0 0
      %543 = vmatmul.mubr.bf16.gmra.mrb[0].mxu0 %v499
      %v544 = vpop.f32.mrb[0].mxu0
      %v545 = vadd.f32 0.0, %v544
      %v546 = vpop.f32.mrb[0].mxu0
      %v547 = vadd.f32 0.0, %v546
      %v548 = vpop.f32.mrb[0].mxu0
      %v549 = vpop.f32.mrb[0].mxu0
      %550 = vdwg.mxu0
      %551 = vmatprep.subr.bf16.mxu0 0
      %552 = vmatpush1.bf16.msra.mxu0 %v508
      %553 = vmatprep.subr.bf16.mxu0 0
      %554 = vmatpush1.bf16.msra.mxu0 0
      %555 = vmatprep.subr.bf16.mxu0 0
      %556 = vmatpush1.bf16.msra.mxu0 0
      %557 = vmatprep.subr.bf16.mxu0 0
      %558 = vmatpush1.bf16.msra.mxu0 0
      %559 = vmatprep.subr.bf16.mxu0 0
      %560 = vmatpush1.bf16.msra.mxu0 0
      %561 = vmatprep.subr.bf16.mxu0 0
      %562 = vmatpush1.bf16.msra.mxu0 0
      %563 = vmatprep.subr.bf16.mxu0 0
      %564 = vmatpush1.bf16.msra.mxu0 0
      %565 = vmatprep.subr.bf16.mxu0 0
      %566 = vmatpush1.bf16.msra.mxu0 0
      %567 = vmatprep.subr.bf16.mxu0 0
      %568 = vmatpush1.bf16.msra.mxu0 0
      %569 = vmatprep.subr.bf16.mxu0 0
      %570 = vmatpush1.bf16.msra.mxu0 0
      %571 = vmatprep.subr.bf16.mxu0 0
      %572 = vmatpush1.bf16.msra.mxu0 0
      %573 = vmatprep.subr.bf16.mxu0 0
      %574 = vmatpush1.bf16.msra.mxu0 0
      %575 = vmatprep.subr.bf16.mxu0 0
      %576 = vmatpush1.bf16.msra.mxu0 0
      %577 = vmatprep.subr.bf16.mxu0 0
      %578 = vmatpush1.bf16.msra.mxu0 0
      %579 = vmatprep.subr.bf16.mxu0 0
      %580 = vmatpush1.bf16.msra.mxu0 0
      %581 = vmatprep.subr.bf16.mxu0 0
      %582 = vmatpush1.bf16.msra.mxu0 0
      %583 = vmatprep.mubr.bf16.mxu0 0
      %584 = vmatmul.mubr.bf16.gmra.mrb[0].mxu0 %v499
      %v585 = vpop.f32.mrb[0].mxu0
      %v586 = vadd.f32 0.0, %v585
      %v587 = vpop.f32.mrb[0].mxu0
      %v588 = vpop.f32.mrb[0].mxu0
      %v589 = vpop.f32.mrb[0].mxu0
      %590 = vdwg.mxu0
      %v591 = vadd.f32 %v419, %v545
      %v592 = vadd.f32 %v421, %v547
      %v593 = vadd.f32 %v460, %v586
      %s594 = scalar_lea.vmem %s1, 12
      %v595 = vld [vmem:[%s594] sm:$0xf]
      %v596 = vld [vmem:[%s207] sm:$0xff]
      %v598 = vcombine.high %v596, %v596
      %v600 = vunpack.c.l.s4 1983009808
      %v601 = vunpack.c.0.s8 %v600
      %v602 = vlaneseq
      %v603 = vshrl.u32 %v602, 7
      %v604 = vsub.s32 %v601, %v603
      %v605 = vrot.slane %v596, %v604
      %v607 = vunpack.c.l.s4 1983009808
      %v608 = vunpack.c.0.s8 %v607
      %v609 = vlaneseq
      %v610 = vshrl.u32 %v609, 7
      %v611 = vsub.s32 %v608, %v610
      %v612 = vrot.slane %v598, %v611
      %v613 = vcombine.high %v605, %v605
      %v614 = vcombine.high %v612, %v612
      %615 = vrot.lane.b32.xlu0 %v605, 110
      %v616 = vpop.permute.xlu0 %615
      %617 = vrot.lane.b32.xlu0 %v613, 110
      %v618 = vpop.permute.xlu0 %617
      %619 = vrot.lane.b32.xlu0 %v612, 110
      %v620 = vpop.permute.xlu0 %619
      %621 = vrot.lane.b32.xlu0 %v614, 110
      %v622 = vpop.permute.xlu0 %621
      %vm623 = vcmask 900096
      %v624 = vsel %vm623, %v616, %v618
      %v625 = vsel %vm623, %v618, %v620
      %v626 = vsel %vm623, %v620, %v622
      %v628 = vsel %vm260, %v595, 0
      %v631 = vsel %vm264, %v624, 0
      %v634 = vsel %vm264, %v625, 0
      %v637 = vsel %vm264, %v626, 0
      %639 = vmatprep.subr.bf16.mxu0 %v634
      %640 = vmatpush1.bf16.msra.mxu0 %v631
      %641 = vmatprep.subr.bf16.mxu0 0
      %642 = vmatpush1.bf16.msra.mxu0 0
      %643 = vmatprep.subr.bf16.mxu0 0
      %644 = vmatpush1.bf16.msra.mxu0 0
      %645 = vmatprep.subr.bf16.mxu0 0
      %646 = vmatpush1.bf16.msra.mxu0 0
      %647 = vmatprep.subr.bf16.mxu0 0
      %648 = vmatpush1.bf16.msra.mxu0 0
      %649 = vmatprep.subr.bf16.mxu0 0
      %650 = vmatpush1.bf16.msra.mxu0 0
      %651 = vmatprep.subr.bf16.mxu0 0
      %652 = vmatpush1.bf16.msra.mxu0 0
      %653 = vmatprep.subr.bf16.mxu0 0
      %654 = vmatpush1.bf16.msra.mxu0 0
      %655 = vmatprep.subr.bf16.mxu0 0
      %656 = vmatpush1.bf16.msra.mxu0 0
      %657 = vmatprep.subr.bf16.mxu0 0
      %658 = vmatpush1.bf16.msra.mxu0 0
      %659 = vmatprep.subr.bf16.mxu0 0
      %660 = vmatpush1.bf16.msra.mxu0 0
      %661 = vmatprep.subr.bf16.mxu0 0
      %662 = vmatpush1.bf16.msra.mxu0 0
      %663 = vmatprep.subr.bf16.mxu0 0
      %664 = vmatpush1.bf16.msra.mxu0 0
      %665 = vmatprep.subr.bf16.mxu0 0
      %666 = vmatpush1.bf16.msra.mxu0 0
      %667 = vmatprep.subr.bf16.mxu0 0
      %668 = vmatpush1.bf16.msra.mxu0 0
      %669 = vmatprep.subr.bf16.mxu0 0
      %670 = vmatpush1.bf16.msra.mxu0 0
      %671 = vmatprep.mubr.bf16.mxu0 0
      %672 = vmatmul.mubr.bf16.gmra.mrb[0].mxu0 %v628
      %v673 = vpop.f32.mrb[0].mxu0
      %v674 = vadd.f32 0.0, %v673
      %v675 = vpop.f32.mrb[0].mxu0
      %v676 = vadd.f32 0.0, %v675
      %v677 = vpop.f32.mrb[0].mxu0
      %v678 = vpop.f32.mrb[0].mxu0
      %679 = vdwg.mxu0
      %680 = vmatprep.subr.bf16.mxu0 0
      %681 = vmatpush1.bf16.msra.mxu0 %v637
      %682 = vmatprep.subr.bf16.mxu0 0
      %683 = vmatpush1.bf16.msra.mxu0 0
      %684 = vmatprep.subr.bf16.mxu0 0
      %685 = vmatpush1.bf16.msra.mxu0 0
      %686 = vmatprep.subr.bf16.mxu0 0
      %687 = vmatpush1.bf16.msra.mxu0 0
      %688 = vmatprep.subr.bf16.mxu0 0
      %689 = vmatpush1.bf16.msra.mxu0 0
      %690 = vmatprep.subr.bf16.mxu0 0
      %691 = vmatpush1.bf16.msra.mxu0 0
      %692 = vmatprep.subr.bf16.mxu0 0
      %693 = vmatpush1.bf16.msra.mxu0 0
      %694 = vmatprep.subr.bf16.mxu0 0
      %695 = vmatpush1.bf16.msra.mxu0 0
      %696 = vmatprep.subr.bf16.mxu0 0
      %697 = vmatpush1.bf16.msra.mxu0 0
      %698 = vmatprep.subr.bf16.mxu0 0
      %699 = vmatpush1.bf16.msra.mxu0 0
      %700 = vmatprep.subr.bf16.mxu0 0
      %701 = vmatpush1.bf16.msra.mxu0 0
      %702 = vmatprep.subr.bf16.mxu0 0
      %703 = vmatpush1.bf16.msra.mxu0 0
      %704 = vmatprep.subr.bf16.mxu0 0
      %705 = vmatpush1.bf16.msra.mxu0 0
      %706 = vmatprep.subr.bf16.mxu0 0
      %707 = vmatpush1.bf16.msra.mxu0 0
      %708 = vmatprep.subr.bf16.mxu0 0
      %709 = vmatpush1.bf16.msra.mxu0 0
      %710 = vmatprep.subr.bf16.mxu0 0
      %711 = vmatpush1.bf16.msra.mxu0 0
      %712 = vmatprep.mubr.bf16.mxu0 0
      %713 = vmatmul.mubr.bf16.gmra.mrb[0].mxu0 %v628
      %v714 = vpop.f32.mrb[0].mxu0
      %v715 = vadd.f32 0.0, %v714
      %v716 = vpop.f32.mrb[0].mxu0
      %v717 = vpop.f32.mrb[0].mxu0
      %v718 = vpop.f32.mrb[0].mxu0
      %719 = vdwg.mxu0
      %v720 = vadd.f32 %v591, %v674
      %v721 = vadd.f32 %v592, %v676
      %v722 = vadd.f32 %v593, %v715
      %s723 = scalar_lea.vmem %s1, 16
      %v724 = vld [vmem:[%s723] sm:$0xf]
      %v725 = vld [vmem:[%s207] sm:$0xff]
      %v727 = vcombine.high %v725, %v725
      %v729 = vunpack.c.l.s4 1983009808
      %v730 = vunpack.c.0.s8 %v729
      %v731 = vlaneseq
      %v732 = vshrl.u32 %v731, 7
      %v733 = vsub.s32 %v730, %v732
      %v734 = vrot.slane %v725, %v733
      %v736 = vunpack.c.l.s4 1983009808
      %v737 = vunpack.c.0.s8 %v736
      %v738 = vlaneseq
      %v739 = vshrl.u32 %v738, 7
      %v740 = vsub.s32 %v737, %v739
      %v741 = vrot.slane %v727, %v740
      %v742 = vcombine.high %v734, %v734
      %v743 = vcombine.high %v741, %v741
      %744 = vrot.lane.b32.xlu0 %v734, 109
      %v745 = vpop.permute.xlu0 %744
      %746 = vrot.lane.b32.xlu0 %v742, 109
      %v747 = vpop.permute.xlu0 %746
      %748 = vrot.lane.b32.xlu0 %v741, 109
      %v749 = vpop.permute.xlu0 %748
      %750 = vrot.lane.b32.xlu0 %v743, 109
      %v751 = vpop.permute.xlu0 %750
      %vm752 = vcmask 891904
      %v753 = vsel %vm752, %v745, %v747
      %v754 = vsel %vm752, %v747, %v749
      %v755 = vsel %vm752, %v749, %v751
      %v757 = vsel %vm260, %v724, 0
      %v760 = vsel %vm264, %v753, 0
      %v763 = vsel %vm264, %v754, 0
      %v766 = vsel %vm264, %v755, 0
      %768 = vmatprep.subr.bf16.mxu0 %v763
      %769 = vmatpush1.bf16.msra.mxu0 %v760
      %770 = vmatprep.subr.bf16.mxu0 0
      %771 = vmatpush1.bf16.msra.mxu0 0
      %772 = vmatprep.subr.bf16.mxu0 0
      %773 = vmatpush1.bf16.msra.mxu0 0
      %774 = vmatprep.subr.bf16.mxu0 0
      %775 = vmatpush1.bf16.msra.mxu0 0
      %776 = vmatprep.subr.bf16.mxu0 0
      %777 = vmatpush1.bf16.msra.mxu0 0
      %778 = vmatprep.subr.bf16.mxu0 0
      %779 = vmatpush1.bf16.msra.mxu0 0
      %780 = vmatprep.subr.bf16.mxu0 0
      %781 = vmatpush1.bf16.msra.mxu0 0
      %782 = vmatprep.subr.bf16.mxu0 0
      %783 = vmatpush1.bf16.msra.mxu0 0
      %784 = vmatprep.subr.bf16.mxu0 0
      %785 = vmatpush1.bf16.msra.mxu0 0
      %786 = vmatprep.subr.bf16.mxu0 0
      %787 = vmatpush1.bf16.msra.mxu0 0
      %788 = vmatprep.subr.bf16.mxu0 0
      %789 = vmatpush1.bf16.msra.mxu0 0
      %790 = vmatprep.subr.bf16.mxu0 0
      %791 = vmatpush1.bf16.msra.mxu0 0
      %792 = vmatprep.subr.bf16.mxu0 0
      %793 = vmatpush1.bf16.msra.mxu0 0
      %794 = vmatprep.subr.bf16.mxu0 0
      %795 = vmatpush1.bf16.msra.mxu0 0
      %796 = vmatprep.subr.bf16.mxu0 0
      %797 = vmatpush1.bf16.msra.mxu0 0
      %798 = vmatprep.subr.bf16.mxu0 0
      %799 = vmatpush1.bf16.msra.mxu0 0
      %800 = vmatprep.mubr.bf16.mxu0 0
      %801 = vmatmul.mubr.bf16.gmra.mrb[0].mxu0 %v757
      %v802 = vpop.f32.mrb[0].mxu0
      %v803 = vadd.f32 0.0, %v802
      %v804 = vpop.f32.mrb[0].mxu0
      %v805 = vadd.f32 0.0, %v804
      %v806 = vpop.f32.mrb[0].mxu0
      %v807 = vpop.f32.mrb[0].mxu0
      %808 = vdwg.mxu0
      %809 = vmatprep.subr.bf16.mxu0 0
      %810 = vmatpush1.bf16.msra.mxu0 %v766
      %811 = vmatprep.subr.bf16.mxu0 0
      %812 = vmatpush1.bf16.msra.mxu0 0
      %813 = vmatprep.subr.bf16.mxu0 0
      %814 = vmatpush1.bf16.msra.mxu0 0
      %815 = vmatprep.subr.bf16.mxu0 0
      %816 = vmatpush1.bf16.msra.mxu0 0
      %817 = vmatprep.subr.bf16.mxu0 0
      %818 = vmatpush1.bf16.msra.mxu0 0
      %819 = vmatprep.subr.bf16.mxu0 0
      %820 = vmatpush1.bf16.msra.mxu0 0
      %821 = vmatprep.subr.bf16.mxu0 0
      %822 = vmatpush1.bf16.msra.mxu0 0
      %823 = vmatprep.subr.bf16.mxu0 0
      %824 = vmatpush1.bf16.msra.mxu0 0
      %825 = vmatprep.subr.bf16.mxu0 0
      %826 = vmatpush1.bf16.msra.mxu0 0
      %827 = vmatprep.subr.bf16.mxu0 0
      %828 = vmatpush1.bf16.msra.mxu0 0
      %829 = vmatprep.subr.bf16.mxu0 0
      %830 = vmatpush1.bf16.msra.mxu0 0
      %831 = vmatprep.subr.bf16.mxu0 0
      %832 = vmatpush1.bf16.msra.mxu0 0
      %833 = vmatprep.subr.bf16.mxu0 0
      %834 = vmatpush1.bf16.msra.mxu0 0
      %835 = vmatprep.subr.bf16.mxu0 0
      %836 = vmatpush1.bf16.msra.mxu0 0
      %837 = vmatprep.subr.bf16.mxu0 0
      %838 = vmatpush1.bf16.msra.mxu0 0
      %839 = vmatprep.subr.bf16.mxu0 0
      %840 = vmatpush1.bf16.msra.mxu0 0
      %841 = vmatprep.mubr.bf16.mxu0 0
      %842 = vmatmul.mubr.bf16.gmra.mrb[0].mxu0 %v757
      %v843 = vpop.f32.mrb[0].mxu0
      %v844 = vadd.f32 0.0, %v843
      %v845 = vpop.f32.mrb[0].mxu0
      %v846 = vpop.f32.mrb[0].mxu0
      %v847 = vpop.f32.mrb[0].mxu0
      %848 = vdwg.mxu0
      %v849 = vadd.f32 %v720, %v803
      %v850 = vadd.f32 %v721, %v805
      %v851 = vadd.f32 %v722, %v844
      %s852 = scalar_lea.vmem %s1, 20
      %v853 = vld [vmem:[%s852] sm:$0xf]
      %v854 = vld [vmem:[%s207] sm:$0xff]
      %v856 = vcombine.high %v854, %v854
      %v858 = vunpack.c.l.s4 1983009808
      %v859 = vunpack.c.0.s8 %v858
      %v860 = vlaneseq
      %v861 = vshrl.u32 %v860, 7
      %v862 = vsub.s32 %v859, %v861
      %v863 = vrot.slane %v854, %v862
      %v865 = vunpack.c.l.s4 1983009808
      %v866 = vunpack.c.0.s8 %v865
      %v867 = vlaneseq
      %v868 = vshrl.u32 %v867, 7
      %v869 = vsub.s32 %v866, %v868
      %v870 = vrot.slane %v856, %v869
      %v871 = vcombine.high %v863, %v863
      %v872 = vcombine.high %v870, %v870
      %873 = vrot.lane.b32.xlu0 %v863, 108
      %v874 = vpop.permute.xlu0 %873
      %875 = vrot.lane.b32.xlu0 %v871, 108
      %v876 = vpop.permute.xlu0 %875
      %877 = vrot.lane.b32.xlu0 %v870, 108
      %v878 = vpop.permute.xlu0 %877
      %879 = vrot.lane.b32.xlu0 %v872, 108
      %v880 = vpop.permute.xlu0 %879
      %vm881 = vcmask 883712
      %v882 = vsel %vm881, %v874, %v876
      %v883 = vsel %vm881, %v876, %v878
      %v884 = vsel %vm881, %v878, %v880
      %v886 = vsel %vm260, %v853, 0
      %v889 = vsel %vm264, %v882, 0
      %v892 = vsel %vm264, %v883, 0
      %v895 = vsel %vm264, %v884, 0
      %897 = vmatprep.subr.bf16.mxu0 %v892
      %898 = vmatpush1.bf16.msra.mxu0 %v889
      %899 = vmatprep.subr.bf16.mxu0 0
      %900 = vmatpush1.bf16.msra.mxu0 0
      %901 = vmatprep.subr.bf16.mxu0 0
      %902 = vmatpush1.bf16.msra.mxu0 0
      %903 = vmatprep.subr.bf16.mxu0 0
      %904 = vmatpush1.bf16.msra.mxu0 0
      %905 = vmatprep.subr.bf16.mxu0 0
      %906 = vmatpush1.bf16.msra.mxu0 0
      %907 = vmatprep.subr.bf16.mxu0 0
      %908 = vmatpush1.bf16.msra.mxu0 0
      %909 = vmatprep.subr.bf16.mxu0 0
      %910 = vmatpush1.bf16.msra.mxu0 0
      %911 = vmatprep.subr.bf16.mxu0 0
      %912 = vmatpush1.bf16.msra.mxu0 0
      %913 = vmatprep.subr.bf16.mxu0 0
      %914 = vmatpush1.bf16.msra.mxu0 0
      %915 = vmatprep.subr.bf16.mxu0 0
      %916 = vmatpush1.bf16.msra.mxu0 0
      %917 = vmatprep.subr.bf16.mxu0 0
      %918 = vmatpush1.bf16.msra.mxu0 0
      %919 = vmatprep.subr.bf16.mxu0 0
      %920 = vmatpush1.bf16.msra.mxu0 0
      %921 = vmatprep.subr.bf16.mxu0 0
      %922 = vmatpush1.bf16.msra.mxu0 0
      %923 = vmatprep.subr.bf16.mxu0 0
      %924 = vmatpush1.bf16.msra.mxu0 0
      %925 = vmatprep.subr.bf16.mxu0 0
      %926 = vmatpush1.bf16.msra.mxu0 0
      %927 = vmatprep.subr.bf16.mxu0 0
      %928 = vmatpush1.bf16.msra.mxu0 0
      %929 = vmatprep.mubr.bf16.mxu0 0
      %930 = vmatmul.mubr.bf16.gmra.mrb[0].mxu0 %v886
      %v931 = vpop.f32.mrb[0].mxu0
      %v932 = vadd.f32 0.0, %v931
      %v933 = vpop.f32.mrb[0].mxu0
      %v934 = vadd.f32 0.0, %v933
      %v935 = vpop.f32.mrb[0].mxu0
      %v936 = vpop.f32.mrb[0].mxu0
      %937 = vdwg.mxu0
      %938 = vmatprep.subr.bf16.mxu0 0
      %939 = vmatpush1.bf16.msra.mxu0 %v895
      %940 = vmatprep.subr.bf16.mxu0 0
      %941 = vmatpush1.bf16.msra.mxu0 0
      %942 = vmatprep.subr.bf16.mxu0 0
      %943 = vmatpush1.bf16.msra.mxu0 0
      %944 = vmatprep.subr.bf16.mxu0 0
      %945 = vmatpush1.bf16.msra.mxu0 0
      %946 = vmatprep.subr.bf16.mxu0 0
      %947 = vmatpush1.bf16.msra.mxu0 0
      %948 = vmatprep.subr.bf16.mxu0 0
      %949 = vmatpush1.bf16.msra.mxu0 0
      %950 = vmatprep.subr.bf16.mxu0 0
      %951 = vmatpush1.bf16.msra.mxu0 0
      %952 = vmatprep.subr.bf16.mxu0 0
      %953 = vmatpush1.bf16.msra.mxu0 0
      %954 = vmatprep.subr.bf16.mxu0 0
      %955 = vmatpush1.bf16.msra.mxu0 0
      %956 = vmatprep.subr.bf16.mxu0 0
      %957 = vmatpush1.bf16.msra.mxu0 0
      %958 = vmatprep.subr.bf16.mxu0 0
      %959 = vmatpush1.bf16.msra.mxu0 0
      %960 = vmatprep.subr.bf16.mxu0 0
      %961 = vmatpush1.bf16.msra.mxu0 0
      %962 = vmatprep.subr.bf16.mxu0 0
      %963 = vmatpush1.bf16.msra.mxu0 0
      %964 = vmatprep.subr.bf16.mxu0 0
      %965 = vmatpush1.bf16.msra.mxu0 0
      %966 = vmatprep.subr.bf16.mxu0 0
      %967 = vmatpush1.bf16.msra.mxu0 0
      %968 = vmatprep.subr.bf16.mxu0 0
      %969 = vmatpush1.bf16.msra.mxu0 0
      %970 = vmatprep.mubr.bf16.mxu0 0
      %971 = vmatmul.mubr.bf16.gmra.mrb[0].mxu0 %v886
      %v972 = vpop.f32.mrb[0].mxu0
      %v973 = vadd.f32 0.0, %v972
      %v974 = vpop.f32.mrb[0].mxu0
      %v975 = vpop.f32.mrb[0].mxu0
      %v976 = vpop.f32.mrb[0].mxu0
      %977 = vdwg.mxu0
      %v978 = vadd.f32 %v849, %v932
      %v979 = vadd.f32 %v850, %v934
      %v980 = vadd.f32 %v851, %v973
      %s981 = scalar_lea.vmem %s1, 24
      %v982 = vld [vmem:[%s981] sm:$0xf]
      %v983 = vld [vmem:[%s207] sm:$0xff]
      %v985 = vcombine.high %v983, %v983
      %v987 = vunpack.c.l.s4 1983009808
      %v988 = vunpack.c.0.s8 %v987
      %v989 = vlaneseq
      %v990 = vshrl.u32 %v989, 7
      %v991 = vsub.s32 %v988, %v990
      %v992 = vrot.slane %v983, %v991
      %v994 = vunpack.c.l.s4 1983009808
      %v995 = vunpack.c.0.s8 %v994
      %v996 = vlaneseq
      %v997 = vshrl.u32 %v996, 7
      %v998 = vsub.s32 %v995, %v997
      %v999 = vrot.slane %v985, %v998
      %v1000 = vcombine.high %v992, %v992
      %v1001 = vcombine.high %v999, %v999
      %1002 = vrot.lane.b32.xlu0 %v992, 92
      %v1003 = vpop.permute.xlu0 %1002
      %1004 = vrot.lane.b32.xlu0 %v1000, 92
      %v1005 = vpop.permute.xlu0 %1004
      %1006 = vrot.lane.b32.xlu0 %v999, 92
      %v1007 = vpop.permute.xlu0 %1006
      %1008 = vrot.lane.b32.xlu0 %v1001, 92
      %v1009 = vpop.permute.xlu0 %1008
      %vm1010 = vcmask 752640
      %v1011 = vsel %vm1010, %v1003, %v1005
      %v1012 = vsel %vm1010, %v1005, %v1007
      %v1013 = vsel %vm1010, %v1007, %v1009
      %v1015 = vsel %vm260, %v982, 0
      %v1018 = vsel %vm264, %v1011, 0
      %v1021 = vsel %vm264, %v1012, 0
      %v1024 = vsel %vm264, %v1013, 0
      %1026 = vmatprep.subr.bf16.mxu0 %v1021
      %1027 = vmatpush1.bf16.msra.mxu0 %v1018
      %1028 = vmatprep.subr.bf16.mxu0 0
      %1029 = vmatpush1.bf16.msra.mxu0 0
      %1030 = vmatprep.subr.bf16.mxu0 0
      %1031 = vmatpush1.bf16.msra.mxu0 0
      %1032 = vmatprep.subr.bf16.mxu0 0
      %1033 = vmatpush1.bf16.msra.mxu0 0
      %1034 = vmatprep.subr.bf16.mxu0 0
      %1035 = vmatpush1.bf16.msra.mxu0 0
      %1036 = vmatprep.subr.bf16.mxu0 0
      %1037 = vmatpush1.bf16.msra.mxu0 0
      %1038 = vmatprep.subr.bf16.mxu0 0
      %1039 = vmatpush1.bf16.msra.mxu0 0
      %1040 = vmatprep.subr.bf16.mxu0 0
      %1041 = vmatpush1.bf16.msra.mxu0 0
      %1042 = vmatprep.subr.bf16.mxu0 0
      %1043 = vmatpush1.bf16.msra.mxu0 0
      %1044 = vmatprep.subr.bf16.mxu0 0
      %1045 = vmatpush1.bf16.msra.mxu0 0
      %1046 = vmatprep.subr.bf16.mxu0 0
      %1047 = vmatpush1.bf16.msra.mxu0 0
      %1048 = vmatprep.subr.bf16.mxu0 0
      %1049 = vmatpush1.bf16.msra.mxu0 0
      %1050 = vmatprep.subr.bf16.mxu0 0
      %1051 = vmatpush1.bf16.msra.mxu0 0
      %1052 = vmatprep.subr.bf16.mxu0 0
      %1053 = vmatpush1.bf16.msra.mxu0 0
      %1054 = vmatprep.subr.bf16.mxu0 0
      %1055 = vmatpush1.bf16.msra.mxu0 0
      %1056 = vmatprep.subr.bf16.mxu0 0
      %1057 = vmatpush1.bf16.msra.mxu0 0
      %1058 = vmatprep.mubr.bf16.mxu0 0
      %1059 = vmatmul.mubr.bf16.gmra.mrb[0].mxu0 %v1015
      %v1060 = vpop.f32.mrb[0].mxu0
      %v1061 = vadd.f32 0.0, %v1060
      %v1062 = vpop.f32.mrb[0].mxu0
      %v1063 = vadd.f32 0.0, %v1062
      %v1064 = vpop.f32.mrb[0].mxu0
      %v1065 = vpop.f32.mrb[0].mxu0
      %1066 = vdwg.mxu0
      %1067 = vmatprep.subr.bf16.mxu0 0
      %1068 = vmatpush1.bf16.msra.mxu0 %v1024
      %1069 = vmatprep.subr.bf16.mxu0 0
      %1070 = vmatpush1.bf16.msra.mxu0 0
      %1071 = vmatprep.subr.bf16.mxu0 0
      %1072 = vmatpush1.bf16.msra.mxu0 0
      %1073 = vmatprep.subr.bf16.mxu0 0
      %1074 = vmatpush1.bf16.msra.mxu0 0
      %1075 = vmatprep.subr.bf16.mxu0 0
      %1076 = vmatpush1.bf16.msra.mxu0 0
      %1077 = vmatprep.subr.bf16.mxu0 0
      %1078 = vmatpush1.bf16.msra.mxu0 0
      %1079 = vmatprep.subr.bf16.mxu0 0
      %1080 = vmatpush1.bf16.msra.mxu0 0
      %1081 = vmatprep.subr.bf16.mxu0 0
      %1082 = vmatpush1.bf16.msra.mxu0 0
      %1083 = vmatprep.subr.bf16.mxu0 0
      %1084 = vmatpush1.bf16.msra.mxu0 0
      %1085 = vmatprep.subr.bf16.mxu0 0
      %1086 = vmatpush1.bf16.msra.mxu0 0
      %1087 = vmatprep.subr.bf16.mxu0 0
      %1088 = vmatpush1.bf16.msra.mxu0 0
      %1089 = vmatprep.subr.bf16.mxu0 0
      %1090 = vmatpush1.bf16.msra.mxu0 0
      %1091 = vmatprep.subr.bf16.mxu0 0
      %1092 = vmatpush1.bf16.msra.mxu0 0
      %1093 = vmatprep.subr.bf16.mxu0 0
      %1094 = vmatpush1.bf16.msra.mxu0 0
      %1095 = vmatprep.subr.bf16.mxu0 0
      %1096 = vmatpush1.bf16.msra.mxu0 0
      %1097 = vmatprep.subr.bf16.mxu0 0
      %1098 = vmatpush1.bf16.msra.mxu0 0
      %1099 = vmatprep.mubr.bf16.mxu0 0
      %1100 = vmatmul.mubr.bf16.gmra.mrb[0].mxu0 %v1015
      %v1101 = vpop.f32.mrb[0].mxu0
      %v1102 = vadd.f32 0.0, %v1101
      %v1103 = vpop.f32.mrb[0].mxu0
      %v1104 = vpop.f32.mrb[0].mxu0
      %v1105 = vpop.f32.mrb[0].mxu0
      %1106 = vdwg.mxu0
      %v1107 = vadd.f32 %v978, %v1061
      %v1108 = vadd.f32 %v979, %v1063
      %v1109 = vadd.f32 %v980, %v1102
      %s1110 = scalar_lea.vmem %s1, 28
      %v1111 = vld [vmem:[%s1110] sm:$0xf]
      %v1112 = vld [vmem:[%s207] sm:$0xff]
      %v1114 = vcombine.high %v1112, %v1112
      %v1116 = vunpack.c.l.s4 1983009808
      %v1117 = vunpack.c.0.s8 %v1116
      %v1118 = vlaneseq
      %v1119 = vshrl.u32 %v1118, 7
      %v1120 = vsub.s32 %v1117, %v1119
      %v1121 = vrot.slane %v1112, %v1120
      %v1123 = vunpack.c.l.s4 1983009808
      %v1124 = vunpack.c.0.s8 %v1123
      %v1125 = vlaneseq
      %v1126 = vshrl.u32 %v1125, 7
      %v1127 = vsub.s32 %v1124, %v1126
      %v1128 = vrot.slane %v1114, %v1127
      %v1129 = vcombine.high %v1121, %v1121
      %v1130 = vcombine.high %v1128, %v1128
      %1131 = vrot.lane.b32.xlu0 %v1121, 91
      %v1132 = vpop.permute.xlu0 %1131
      %1133 = vrot.lane.b32.xlu0 %v1129, 91
      %v1134 = vpop.permute.xlu0 %1133
      %1135 = vrot.lane.b32.xlu0 %v1128, 91
      %v1136 = vpop.permute.xlu0 %1135
      %1137 = vrot.lane.b32.xlu0 %v1130, 91
      %v1138 = vpop.permute.xlu0 %1137
      %vm1139 = vcmask 744448
      %v1140 = vsel %vm1139, %v1132, %v1134
      %v1141 = vsel %vm1139, %v1134, %v1136
      %v1142 = vsel %vm1139, %v1136, %v1138
      %v1144 = vsel %vm260, %v1111, 0
      %v1147 = vsel %vm264, %v1140, 0
      %v1150 = vsel %vm264, %v1141, 0
      %v1153 = vsel %vm264, %v1142, 0
      %1155 = vmatprep.subr.bf16.mxu0 %v1150
      %1156 = vmatpush1.bf16.msra.mxu0 %v1147
      %1157 = vmatprep.subr.bf16.mxu0 0
      %1158 = vmatpush1.bf16.msra.mxu0 0
      %1159 = vmatprep.subr.bf16.mxu0 0
      %1160 = vmatpush1.bf16.msra.mxu0 0
      %1161 = vmatprep.subr.bf16.mxu0 0
      %1162 = vmatpush1.bf16.msra.mxu0 0
      %1163 = vmatprep.subr.bf16.mxu0 0
      %1164 = vmatpush1.bf16.msra.mxu0 0
      %1165 = vmatprep.subr.bf16.mxu0 0
      %1166 = vmatpush1.bf16.msra.mxu0 0
      %1167 = vmatprep.subr.bf16.mxu0 0
      %1168 = vmatpush1.bf16.msra.mxu0 0
      %1169 = vmatprep.subr.bf16.mxu0 0
      %1170 = vmatpush1.bf16.msra.mxu0 0
      %1171 = vmatprep.subr.bf16.mxu0 0
      %1172 = vmatpush1.bf16.msra.mxu0 0
      %1173 = vmatprep.subr.bf16.mxu0 0
      %1174 = vmatpush1.bf16.msra.mxu0 0
      %1175 = vmatprep.subr.bf16.mxu0 0
      %1176 = vmatpush1.bf16.msra.mxu0 0
      %1177 = vmatprep.subr.bf16.mxu0 0
      %1178 = vmatpush1.bf16.msra.mxu0 0
      %1179 = vmatprep.subr.bf16.mxu0 0
      %1180 = vmatpush1.bf16.msra.mxu0 0
      %1181 = vmatprep.subr.bf16.mxu0 0
      %1182 = vmatpush1.bf16.msra.mxu0 0
      %1183 = vmatprep.subr.bf16.mxu0 0
      %1184 = vmatpush1.bf16.msra.mxu0 0
      %1185 = vmatprep.subr.bf16.mxu0 0
      %1186 = vmatpush1.bf16.msra.mxu0 0
      %1187 = vmatprep.mubr.bf16.mxu0 0
      %1188 = vmatmul.mubr.bf16.gmra.mrb[0].mxu0 %v1144
      %v1189 = vpop.f32.mrb[0].mxu0
      %v1190 = vadd.f32 0.0, %v1189
      %v1191 = vpop.f32.mrb[0].mxu0
      %v1192 = vadd.f32 0.0, %v1191
      %v1193 = vpop.f32.mrb[0].mxu0
      %v1194 = vpop.f32.mrb[0].mxu0
      %1195 = vdwg.mxu0
      %1196 = vmatprep.subr.bf16.mxu0 0
      %1197 = vmatpush1.bf16.msra.mxu0 %v1153
      %1198 = vmatprep.subr.bf16.mxu0 0
      %1199 = vmatpush1.bf16.msra.mxu0 0
      %1200 = vmatprep.subr.bf16.mxu0 0
      %1201 = vmatpush1.bf16.msra.mxu0 0
      %1202 = vmatprep.subr.bf16.mxu0 0
      %1203 = vmatpush1.bf16.msra.mxu0 0
      %1204 = vmatprep.subr.bf16.mxu0 0
      %1205 = vmatpush1.bf16.msra.mxu0 0
      %1206 = vmatprep.subr.bf16.mxu0 0
      %1207 = vmatpush1.bf16.msra.mxu0 0
      %1208 = vmatprep.subr.bf16.mxu0 0
      %1209 = vmatpush1.bf16.msra.mxu0 0
      %1210 = vmatprep.subr.bf16.mxu0 0
      %1211 = vmatpush1.bf16.msra.mxu0 0
      %1212 = vmatprep.subr.bf16.mxu0 0
      %1213 = vmatpush1.bf16.msra.mxu0 0
      %1214 = vmatprep.subr.bf16.mxu0 0
      %1215 = vmatpush1.bf16.msra.mxu0 0
      %1216 = vmatprep.subr.bf16.mxu0 0
      %1217 = vmatpush1.bf16.msra.mxu0 0
      %1218 = vmatprep.subr.bf16.mxu0 0
      %1219 = vmatpush1.bf16.msra.mxu0 0
      %1220 = vmatprep.subr.bf16.mxu0 0
      %1221 = vmatpush1.bf16.msra.mxu0 0
      %1222 = vmatprep.subr.bf16.mxu0 0
      %1223 = vmatpush1.bf16.msra.mxu0 0
      %1224 = vmatprep.subr.bf16.mxu0 0
      %1225 = vmatpush1.bf16.msra.mxu0 0
      %1226 = vmatprep.subr.bf16.mxu0 0
      %1227 = vmatpush1.bf16.msra.mxu0 0
      %1228 = vmatprep.mubr.bf16.mxu0 0
      %1229 = vmatmul.mubr.bf16.gmra.mrb[0].mxu0 %v1144
      %v1230 = vpop.f32.mrb[0].mxu0
      %v1231 = vadd.f32 0.0, %v1230
      %v1232 = vpop.f32.mrb[0].mxu0
      %v1233 = vpop.f32.mrb[0].mxu0
      %v1234 = vpop.f32.mrb[0].mxu0
      %1235 = vdwg.mxu0
      %v1236 = vadd.f32 %v1107, %v1190
      %v1237 = vadd.f32 %v1108, %v1192
      %v1238 = vadd.f32 %v1109, %v1231
      %s1239 = scalar_lea.vmem %s1, 32
      %v1240 = vld [vmem:[%s1239] sm:$0xf]
      %v1241 = vld [vmem:[%s207] sm:$0xff]
      %v1243 = vcombine.high %v1241, %v1241
      %v1245 = vunpack.c.l.s4 1983009808
      %v1246 = vunpack.c.0.s8 %v1245
      %v1247 = vlaneseq
      %v1248 = vshrl.u32 %v1247, 7
      %v1249 = vsub.s32 %v1246, %v1248
      %v1250 = vrot.slane %v1241, %v1249
      %v1252 = vunpack.c.l.s4 1983009808
      %v1253 = vunpack.c.0.s8 %v1252
      %v1254 = vlaneseq
      %v1255 = vshrl.u32 %v1254, 7
      %v1256 = vsub.s32 %v1253, %v1255
      %v1257 = vrot.slane %v1243, %v1256
      %v1258 = vcombine.high %v1250, %v1250
      %v1259 = vcombine.high %v1257, %v1257
      %1260 = vrot.lane.b32.xlu0 %v1250, 90
      %v1261 = vpop.permute.xlu0 %1260
      %1262 = vrot.lane.b32.xlu0 %v1258, 90
      %v1263 = vpop.permute.xlu0 %1262
      %1264 = vrot.lane.b32.xlu0 %v1257, 90
      %v1265 = vpop.permute.xlu0 %1264
      %1266 = vrot.lane.b32.xlu0 %v1259, 90
      %v1267 = vpop.permute.xlu0 %1266
      %vm1268 = vcmask 736256
      %v1269 = vsel %vm1268, %v1261, %v1263
      %v1270 = vsel %vm1268, %v1263, %v1265
      %v1271 = vsel %vm1268, %v1265, %v1267
      %v1273 = vsel %vm260, %v1240, 0
      %v1276 = vsel %vm264, %v1269, 0
      %v1279 = vsel %vm264, %v1270, 0
      %v1282 = vsel %vm264, %v1271, 0
      %1284 = vmatprep.subr.bf16.mxu0 %v1279
      %1285 = vmatpush1.bf16.msra.mxu0 %v1276
      %1286 = vmatprep.subr.bf16.mxu0 0
      %1287 = vmatpush1.bf16.msra.mxu0 0
      %1288 = vmatprep.subr.bf16.mxu0 0
      %1289 = vmatpush1.bf16.msra.mxu0 0
      %1290 = vmatprep.subr.bf16.mxu0 0
      %1291 = vmatpush1.bf16.msra.mxu0 0
      %1292 = vmatprep.subr.bf16.mxu0 0
      %1293 = vmatpush1.bf16.msra.mxu0 0
      %1294 = vmatprep.subr.bf16.mxu0 0
      %1295 = vmatpush1.bf16.msra.mxu0 0
      %1296 = vmatprep.subr.bf16.mxu0 0
      %1297 = vmatpush1.bf16.msra.mxu0 0
      %1298 = vmatprep.subr.bf16.mxu0 0
      %1299 = vmatpush1.bf16.msra.mxu0 0
      %1300 = vmatprep.subr.bf16.mxu0 0
      %1301 = vmatpush1.bf16.msra.mxu0 0
      %1302 = vmatprep.subr.bf16.mxu0 0
      %1303 = vmatpush1.bf16.msra.mxu0 0
      %1304 = vmatprep.subr.bf16.mxu0 0
      %1305 = vmatpush1.bf16.msra.mxu0 0
      %1306 = vmatprep.subr.bf16.mxu0 0
      %1307 = vmatpush1.bf16.msra.mxu0 0
      %1308 = vmatprep.subr.bf16.mxu0 0
      %1309 = vmatpush1.bf16.msra.mxu0 0
      %1310 = vmatprep.subr.bf16.mxu0 0
      %1311 = vmatpush1.bf16.msra.mxu0 0
      %1312 = vmatprep.subr.bf16.mxu0 0
      %1313 = vmatpush1.bf16.msra.mxu0 0
      %1314 = vmatprep.subr.bf16.mxu0 0
      %1315 = vmatpush1.bf16.msra.mxu0 0
      %1316 = vmatprep.mubr.bf16.mxu0 0
      %1317 = vmatmul.mubr.bf16.gmra.mrb[0].mxu0 %v1273
      %v1318 = vpop.f32.mrb[0].mxu0
      %v1319 = vadd.f32 0.0, %v1318
      %v1320 = vpop.f32.mrb[0].mxu0
      %v1321 = vadd.f32 0.0, %v1320
      %v1322 = vpop.f32.mrb[0].mxu0
      %v1323 = vpop.f32.mrb[0].mxu0
      %1324 = vdwg.mxu0
      %1325 = vmatprep.subr.bf16.mxu0 0
      %1326 = vmatpush1.bf16.msra.mxu0 %v1282
      %1327 = vmatprep.subr.bf16.mxu0 0
      %1328 = vmatpush1.bf16.msra.mxu0 0
      %1329 = vmatprep.subr.bf16.mxu0 0
      %1330 = vmatpush1.bf16.msra.mxu0 0
      %1331 = vmatprep.subr.bf16.mxu0 0
      %1332 = vmatpush1.bf16.msra.mxu0 0
      %1333 = vmatprep.subr.bf16.mxu0 0
      %1334 = vmatpush1.bf16.msra.mxu0 0
      %1335 = vmatprep.subr.bf16.mxu0 0
      %1336 = vmatpush1.bf16.msra.mxu0 0
      %1337 = vmatprep.subr.bf16.mxu0 0
      %1338 = vmatpush1.bf16.msra.mxu0 0
      %1339 = vmatprep.subr.bf16.mxu0 0
      %1340 = vmatpush1.bf16.msra.mxu0 0
      %1341 = vmatprep.subr.bf16.mxu0 0
      %1342 = vmatpush1.bf16.msra.mxu0 0
      %1343 = vmatprep.subr.bf16.mxu0 0
      %1344 = vmatpush1.bf16.msra.mxu0 0
      %1345 = vmatprep.subr.bf16.mxu0 0
      %1346 = vmatpush1.bf16.msra.mxu0 0
      %1347 = vmatprep.subr.bf16.mxu0 0
      %1348 = vmatpush1.bf16.msra.mxu0 0
      %1349 = vmatprep.subr.bf16.mxu0 0
      %1350 = vmatpush1.bf16.msra.mxu0 0
      %1351 = vmatprep.subr.bf16.mxu0 0
      %1352 = vmatpush1.bf16.msra.mxu0 0
      %1353 = vmatprep.subr.bf16.mxu0 0
      %1354 = vmatpush1.bf16.msra.mxu0 0
      %1355 = vmatprep.subr.bf16.mxu0 0
      %1356 = vmatpush1.bf16.msra.mxu0 0
      %1357 = vmatprep.mubr.bf16.mxu0 0
      %1358 = vmatmul.mubr.bf16.gmra.mrb[0].mxu0 %v1273
      %v1359 = vpop.f32.mrb[0].mxu0
      %v1360 = vadd.f32 0.0, %v1359
      %v1361 = vpop.f32.mrb[0].mxu0
      %v1362 = vpop.f32.mrb[0].mxu0
      %v1363 = vpop.f32.mrb[0].mxu0
      %1364 = vdwg.mxu0
      %v1365 = vadd.f32 %v1236, %v1319
      %v1366 = vadd.f32 %v1237, %v1321
      %v1367 = vadd.f32 %v1238, %v1360
      %v1368 = vld [vmem:[%s2] sm:$0xff]
      %1370 = vset.pattern.permute.xlu0 0
      %1371 = vperm.xlu0 %1370, %v1368
      %v1372 = vpop.permute.xlu0 %1371
      %v1374 = vadd.f32 %v1365, %v1372
      %v1375 = vadd.f32 %v1366, %v1372
      %v1376 = vadd.f32 %v1367, %v1372
      %vm1377 = vcmp.gt.f32.partialorder %v1374, 0.0
      %vm1378 = vcmp.gt.f32.partialorder %v1375, 0.0
      %vm1379 = vcmp.gt.f32.partialorder %v1376, 0.0
      %v1380 = vmul.f32 %v1374, 0.2
      %v1381 = vmul.f32 %v1375, 0.2
      %v1382 = vmul.f32 %v1376, 0.2
      %v1383 = vsel %vm1377, %v1374, %v1380
      %v1384 = vsel %vm1378, %v1375, %v1381
      %v1385 = vsel %vm1379, %v1376, %v1382
      // Predicated region
      $region41: #{unet_block_forward.1} parent=35 // pred_check
        %p1386 = pneg %p216
      $region42: #{unet_block_forward.1} parent=35 // pred_check_branch
        %1388 = sbr.rel (%p1386) target = $region44
      $region43: #{unet_block_forward.1} parent=35 // pred_region
        %v1389 = vld [vmem:[%s3] sm:$0x7]
        %v1391 = vlaneseq
        %v1392 = vshrl.u32 %v1391, 7
        %v1393 = vsub.s32 0, %v1392
        %v1394 = vrot.slane %v1389, %v1393
        %v1395 = vlaneseq
        %v1396 = vshrl.u32 %v1395, 7
        %v1397 = vsub.s32 1, %v1396
        %v1398 = vrot.slane %v1389, %v1397
        %v1399 = vlaneseq
        %v1400 = vshrl.u32 %v1399, 7
        %v1401 = vsub.s32 2, %v1400
        %v1402 = vrot.slane %v1389, %v1401
        %v1406 = vmul.f32 %v1383, %v1394
        %v1407 = vmul.f32 %v1384, %v1398
        %v1408 = vmul.f32 %v1385, %v1402
        %v1409 = vld [vmem:[#allocation2] sm:$0xff]
        %v1410 = vadd.f32 %v1406, %v1407
        %v1411 = vadd.f32 %v1410, %v1408
        %1412 = vadd.xlane.f32.xlu0 %v1411
        %v1413 = vpop.xlane.xlu0 %1412
        %v1414 = vadd.f32 %v1409, %v1413
        %vm1415 = vcmask 7168
        %1416 = vst.msk [vmem:[#allocation2] sm:$0xff] %vm1415, %v1414
        %v1417 = vld [vmem:[#allocation3] sm:$0xff]
        %v1418 = vmul.f32 %v1406, %v1406
        %v1419 = vmul.f32 %v1407, %v1407
        %v1420 = vmul.f32 %v1408, %v1408
        %v1421 = vadd.f32 %v1418, %v1419
        %v1422 = vadd.f32 %v1421, %v1420
        %1423 = vadd.xlane.f32.xlu0 %v1422
        %v1424 = vpop.xlane.xlu0 %1423
        %v1425 = vadd.f32 %v1417, %v1424
        %1426 = vst.msk [vmem:[#allocation3] sm:$0xff] %vm1415, %v1425
      $region44: #{unet_block_forward.1} parent=35 // pred_fallthru
        _
      %p1427 = scmp.eq.s32.totalorder %s19, 1
      %p1428 = pnand %p1427, %p217
      %p1429 = pneg %p1428
      // Predicated region
      $region45: #{unet_block_forward.1} parent=35 // pred_check
        _
      $region46: #{unet_block_forward.1} parent=35 // pred_check_branch
        %1431 = sbr.rel (%p1428) target = $region48
      $region47: #{unet_block_forward.1} parent=35 // pred_region
        %v1432 = vld [vmem:[#allocation2] sm:$0xff]
        %v1433 = vmul.f32 %v1432, 0.001953125
        %v1434 = vld [vmem:[#allocation3] sm:$0xff]
        %v1435 = vmul.f32 %v1434, 0.001953125
        %v1436 = vmul.f32 %v1433, %v1433
        %v1437 = vsub.f32 %v1435, %v1436
        %v1438 = vmax.f32 %v1437, 0.0
        %v1439 = vld [vmem:[%s2] sm:$0xff]
        %v1440 = vadd.f32 %v1438, 1e-05
        %v1441 = vrsqrt.pop %v1440
        %1443 = vrot.lane.b32.xlu0 %v1441, 1
        %v1444 = vpop.permute.xlu0 %1443
        %v1446 = vmul.f32 %v1439, %v1444
        %1448 = vrot.lane.b32.xlu0 %v1446, 127
        %v1449 = vpop.permute.xlu0 %1448
        %vm1451 = vcmask 7168
        %1452 = vst.msk [vmem:[#allocation4] sm:$0xff] %vm1451, %v1449
        %v1453 = vld [vmem:[%s2] sm:$0xff]
        %v1454 = vmul.f32 %v1433, %v1449
        %1456 = vrot.lane.b32.xlu0 %v1454, 2
        %v1457 = vpop.permute.xlu0 %1456
        %v1459 = vsub.f32 %v1453, %v1457
        %1461 = vrot.lane.b32.xlu0 %v1459, 126
        %v1462 = vpop.permute.xlu0 %1461
        %1464 = vst.msk [vmem:[#allocation5] sm:$0xff] %vm1451, %v1462
      $region48: #{unet_block_forward.1} parent=35 // pred_fallthru
        _
      // Predicated region
      $region49: #{unet_block_forward.1} parent=35 // pred_check
        %p1465 = pneg %p1427
      $region50: #{unet_block_forward.1} parent=35 // pred_check_branch
        %1467 = sbr.rel (%p1465) target = $region52
      $region51: #{unet_block_forward.1} parent=35 // pred_region
        %v1468 = vld [vmem:[#allocation4] sm:$0xff]
        %1470 = vset.pattern.permute.xlu0 0
        %1471 = vperm.xlu0 %1470, %v1468
        %v1472 = vpop.permute.xlu0 %1471
        %v1474 = vmul.f32 %v1383, %v1472
        %v1475 = vmul.f32 %v1384, %v1472
        %v1476 = vmul.f32 %v1385, %v1472
        %v1477 = vld [vmem:[#allocation5] sm:$0xff]
        %1479 = vset.pattern.permute.xlu0 0
        %1480 = vperm.xlu0 %1479, %v1477
        %v1481 = vpop.permute.xlu0 %1480
        %v1483 = vadd.f32 %v1474, %v1481
        %v1484 = vadd.f32 %v1475, %v1481
        %v1485 = vadd.f32 %v1476, %v1481
        %1486 = vst [vmem:[%s213] sm:$0xff] %v1483
        %1487 = vst [vmem:[%s213 + $0x8] sm:$0xff] %v1484
        %1488 = vst [vmem:[%s213 + $0x10] sm:$0xff] %v1485
      $region52: #{unet_block_forward.1} parent=35 // pred_fallthru
        _
      %s1489 = smul.u32 %s20, %s19
      %p1490 = scmp.lt.s32.totalorder %s1489, 1
      %s1491 = scalar_select %p1490, %s1489, 1
      %s1492 = smul.addr %s1491, 3
      %s1493 = smul.addr %s1492, 8
      %s1494 = scalar_lea.vmem %s4, %s1493
      // Predicated region
      $region53: #{unet_block_forward.1} parent=35 // pred_check
        %p1495 = pneg %p136
      $region54: #{unet_block_forward.1} parent=35 // pred_check_branch
        %1497 = sbr.rel (%p1495) target = $region56
      $region55: #{unet_block_forward.1} parent=35 // pred_region
        %s1498 = smul.u32 %s20, %s19
      $region56: #{unet_block_forward.1} parent=35 // pred_fallthru
        _
    $region36: #{unet_block_forward.1} parent=5 // pred_fallthru
      _
    %p1499 = scmp.le.s32.totalorder 2, %s10
    // Predicated region
    $region57: #{unet_block_forward.1} parent=5 // pred_check
      %p1500 = pneg %p1499
    $region58: #{unet_block_forward.1} parent=5 // pred_check_branch
      %1502 = sbr.rel (%p1500) target = $region60
    $region59: #{unet_block_forward.1} parent=5 // pred_region
      %s1503 = ssub.s32 %s10, 2
      // Predicated region
      $region61: #{unet_block_forward.1} parent=59 // pred_check
        %p1504 = pneg %p142
      $region62: #{unet_block_forward.1} parent=59 // pred_check_branch
        %1506 = sbr.rel (%p1504) target = $region64
      $region63: #{unet_block_forward.1} parent=59 // pred_region
        %s1507 = smul.u32 %s22, %s21
        %p1508 = scmp.lt.s32.totalorder %s1507, 1
        %s1509 = scalar_select %p1508, %s1507, 1
        %s1510 = smul.addr %s1509, 3
        %s1511 = smul.addr %s1510, 8
        %s1512 = scalar_lea.vmem %s4, %s1511
      $region64: #{unet_block_forward.1} parent=59 // pred_fallthru
        _
    $region60: #{unet_block_forward.1} parent=5 // pred_fallthru
      _
  $region6: #{unet_block_forward.1} parent=0 // loop_footer
    %s14 = sadd.s32 1, %s10
  $region7: #{unet_block_forward.1} parent=0 // loop_footer_branch
    %9 = sbr.rel target = $region3
  $region8: #{unet_block_forward.1} parent=0 // loop_exit
    _

</llo_original>
